<compile_context>
chip_gen: v7x
topology: tpu7x:2x2x1
jax: 0.10.0
libtpu: 0.0.40
codegen_flags: <defaults>
</compile_context>

<pallas_src>
import jax
import jax.numpy as jnp
import numpy as np
from jax import lax
from jax.experimental import pallas as pl
from jax.experimental.pallas import tpu as pltpu


def _round_up(x, m):
    return ((x + m - 1) // m) * m


def _cdiv(a, b):
    return (a + b - 1) // b


def _logsigmoid(x):
    # Numerically stable, single-branch log(sigmoid(x)).
    return jnp.minimum(x, 0.0) - jnp.log1p(jnp.exp(-jnp.abs(x)))


def _make_kernel(total_b, tile_b, chunk_b, has_ni):
    """Kernel for a fixed (total batch, tile rows, chunk rows, has-niwords)."""
    n_chunks = tile_b // chunk_b
    n_streams = 4 if has_ni else 3

    def kernel(*refs):
        if has_ni:
            (iword_ref, owords_ref, nwords_ref, niwords_ref,
             itab, otab, out_ref,
             ibuf, obuf, nbuf, nibuf, sem) = refs
            idxs = [iword_ref, owords_ref, nwords_ref, niwords_ref]
            bufs = [ibuf, obuf, nbuf, nibuf]
            tabs = [itab, otab, otab, itab]
        else:
            (iword_ref, owords_ref, nwords_ref,
             itab, otab, out_ref,
             ibuf, obuf, nbuf, sem) = refs
            idxs = [iword_ref, owords_ref, nwords_ref]
            bufs = [ibuf, obuf, nbuf]
            tabs = [itab, otab, otab]

        t = pl.program_id(0)
        tile_base = t * tile_b

        # ---- fused embedding gather: per-row DMAs, one chunk at a time ----
        def issue_chunk(c, slot):
            chunk_base = tile_base + c * chunk_b

            def body(r, carry):
                g = chunk_base + r
                for s in range(n_streams):
                    pltpu.make_async_copy(
                        tabs[s].at[pl.ds(idxs[s][g], 1)],
                        bufs[s].at[slot, pl.ds(r, 1)],
                        sem.at[s, slot]).start()
                return carry

            # Partial unroll: pipelines the SMEM index loads + DMA-descriptor
            # pushes across rows (scalar + vector-misc slots).
            lax.fori_loop(0, chunk_b, body, 0, unroll=min(8, chunk_b))

        def wait_chunk(slot):
            # ONE aggregated wait per stream: the DMA semaphore counts bytes,
            # so a single descriptor sized (chunk_b, D) waits for all chunk_b
            # row copies of that stream.  (Descriptor is never started; the
            # other slot is used as a shape/byte-count-only dummy source.)
            for s in range(n_streams):
                pltpu.make_async_copy(bufs[s].at[1 - slot],
                                      bufs[s].at[slot],
                                      sem.at[s, slot]).wait()

        def compute_chunk(c, slot):
            chunk_base = tile_base + c * chunk_b
            iv = bufs[0][slot].astype(jnp.float32)
            ov = bufs[1][slot].astype(jnp.float32)
            nv = bufs[2][slot].astype(jnp.float32)
            niv = bufs[3][slot].astype(jnp.float32) if has_ni else iv
            pos = jnp.sum(ov * iv, axis=1, keepdims=True)     # (chunk_b, 1)
            neg = jnp.sum(nv * niv, axis=1, keepdims=True)    # (chunk_b, 1)
            per_row = -(_logsigmoid(pos) + _logsigmoid(-neg))
            # Mask padding rows of the last (partial) tile/chunk.
            row_ids = lax.broadcasted_iota(jnp.int32, (chunk_b, 1), 0) + chunk_base
            per_row = jnp.where(row_ids < total_b, per_row, 0.0)
            return jnp.sum(per_row)

        # ---- chunk-level software pipeline (double-buffered gather) ----
        issue_chunk(0, 0)
        tile_sum = jnp.zeros((), jnp.float32)
        for c in range(n_chunks):                  # static, fully visible to LLO
            slot = c & 1
            if c + 1 < n_chunks:
                issue_chunk(c + 1, 1 - slot)       # SMEM reads BEFORE any wait
            wait_chunk(slot)
            tile_sum = tile_sum + compute_chunk(c, slot)

        # Lane-dense (8,128) partial-sum slab for this tile (unmasked store).
        out_ref[...] = jnp.zeros((1, 8, 128), jnp.float32) + tile_sum

    return kernel


def negative_sampling_loss(ivec_table, ovec_table, iword, owords, nwords,
                           niwords=None, *, chunk_b=128, max_tile_b=1024):
    """Fused SGNS loss.

    ivec_table, ovec_table: (V, D) embedding tables (stay in HBM; f32 or bf16).
    iword/owords/nwords[/niwords]: (B,) integer node ids (scalar-prefetched).
    Returns the scalar float32 loss  -(logsig(pos) + logsig(-neg)).mean().
    """
    total_b = int(iword.shape[0])
    dim = int(ivec_table.shape[1])
    has_ni = niwords is not None
    n_streams = 4 if has_ni else 3
    itemsize = max(jnp.dtype(ivec_table.dtype).itemsize,
                   jnp.dtype(ovec_table.dtype).itemsize)

    # --- chunk size: unit of DMA gather + in-tile pipelining (multiple of 8) ---
    chunk_b = int(max(8, min(chunk_b, _round_up(total_b, 8))))
    chunk_b = _round_up(chunk_b, 8)
    # Keep double-buffered scratch comfortably inside every generation's VMEM
    # (v7x has only 64 MiB physical / 32 MiB scoped default).
    while chunk_b > 8 and n_streams * 2 * chunk_b * dim * itemsize > 24 * 1024 * 1024:
        chunk_b = _round_up(max(8, chunk_b // 2), 8)

    # --- tile size: rows per grid step, a multiple of chunk_b ---
    tile_b = min(_round_up(total_b, chunk_b), _round_up(max_tile_b, chunk_b))
    num_tiles = _cdiv(total_b, tile_b)
    # Keep >= 2 tiles when the batch allows it so the "parallel" grid axis can
    # feed both TensorCores on v7x (a single cheap extra step on v5e/v6e).
    if num_tiles < 2 and total_b > 2 * chunk_b:
        tile_b = _round_up(_cdiv(total_b, 2), chunk_b)
        num_tiles = _cdiv(total_b, tile_b)
    b_pad = num_tiles * tile_b

    def _prep_idx(idx):
        idx = jnp.asarray(idx, jnp.int32).reshape(-1)
        # Pad with index 0 (a valid row); padded rows are masked in-kernel.
        return jnp.pad(idx, (0, b_pad - total_b))

    idx_args = [_prep_idx(iword), _prep_idx(owords), _prep_idx(nwords)]
    if has_ni:
        idx_args.append(_prep_idx(niwords))

    scratch = [
        pltpu.VMEM((2, chunk_b, dim), ivec_table.dtype),   # ibuf  (center rows)
        pltpu.VMEM((2, chunk_b, dim), ovec_table.dtype),   # obuf  (context rows)
        pltpu.VMEM((2, chunk_b, dim), ovec_table.dtype),   # nbuf  (neg context rows)
    ]
    if has_ni:
        scratch.append(pltpu.VMEM((2, chunk_b, dim), ivec_table.dtype))  # nibuf
    scratch.append(pltpu.SemaphoreType.DMA((n_streams, 2)))

    scratch_bytes = n_streams * 2 * chunk_b * dim * itemsize
    vmem_limit = int(min(48 * 1024 * 1024,
                         max(32 * 1024 * 1024, 2 * scratch_bytes)))

    grid_spec = pltpu.PrefetchScalarGridSpec(
        num_scalar_prefetch=n_streams,
        grid=(num_tiles,),
        in_specs=[pl.BlockSpec(memory_space=pl.ANY),    # ivectors table (HBM)
                  pl.BlockSpec(memory_space=pl.ANY)],   # ovectors table (HBM)
        out_specs=pl.BlockSpec((1, 8, 128), lambda t, *_: (t, 0, 0)),
        scratch_shapes=scratch,
    )

    partial = pl.pallas_call(
        _make_kernel(total_b, tile_b, chunk_b, has_ni),
        out_shape=jax.ShapeDtypeStruct((num_tiles, 8, 128), jnp.float32),
        grid_spec=grid_spec,
        compiler_params=pltpu.CompilerParams(
            dimension_semantics=("parallel",),  # tiles independent (no carried state)
            vmem_limit_bytes=vmem_limit,
        ),
    )(*idx_args, ivec_table, ovec_table)

    # Tiny cross-tile reduction + mean over the TOTAL batch size.
    return jnp.sum(partial[:, 0, 0]) / total_b


class Word2VecParams:
    """Minimal stand-in for residual2vec's Word2Vec embedding module."""

    def __init__(self, vocab_size, embedding_size, key):
        k1, k2 = jax.random.split(key)
        scale = 0.5 / embedding_size
        self.ivectors = jax.random.uniform(
            k1, (vocab_size, embedding_size), jnp.float32, -scale, scale)
        self.ovectors = jax.random.uniform(
            k2, (vocab_size, embedding_size), jnp.float32, -scale, scale)

    def forward_i(self, idx):
        return self.ivectors[idx]

    def forward_o(self, idx):
        return self.ovectors[idx]


class NegativeSampling:
    def __init__(self, embedding):
        self.embedding = embedding
        self.weights = None

    def __call__(self, iword, owords, nwords, niwords=None):
        return negative_sampling_loss(self.embedding.ivectors,
                                      self.embedding.ovectors,
                                      iword, owords, nwords, niwords)


def _reference_loss(iv, ov, nv, niv=None):
    if niv is None:
        niv = iv
    pos = (ov * iv).sum(axis=1)
    neg = (nv * niv).sum(axis=1)
    return -(jax.nn.log_sigmoid(pos) + jax.nn.log_sigmoid(-neg)).mean()


if __name__ == "__main__":
    vocab_size, embedding_size = 64, 128

    key = jax.random.PRNGKey(0)
    k_emb, k_i, k_o, k_n, k_ni, k_i3, k_o3, k_n3 = jax.random.split(key, 8)

    embedding = Word2VecParams(vocab_size, embedding_size, k_emb)
    model = NegativeSampling(embedding)

    # Check 1: niwords=None path (negative term reuses the center vectors).
    batch = 8
    iword = jax.random.randint(k_i, (batch,), 0, vocab_size)
    owords = jax.random.randint(k_o, (batch,), 0, vocab_size)
    nwords = jax.random.randint(k_n, (batch,), 0, vocab_size)

    loss = jax.block_until_ready(model(iword, owords, nwords))
    expected = _reference_loss(embedding.forward_i(iword),
                               embedding.forward_o(owords),
                               embedding.forward_o(nwords))
    assert np.allclose(np.asarray(loss), np.asarray(expected), rtol=1e-5, atol=1e-5)

    # Check 2: explicit niwords path, 2 tiles + tail masking (B=13, tile=chunk=8).
    batch2 = 13
    iword2 = jax.random.randint(k_i, (batch2,), 0, vocab_size)
    owords2 = jax.random.randint(k_o, (batch2,), 0, vocab_size)
    nwords2 = jax.random.randint(k_n, (batch2,), 0, vocab_size)
    niword2 = jax.random.randint(k_ni, (batch2,), 0, vocab_size)

    loss2 = jax.block_until_ready(
        negative_sampling_loss(embedding.ivectors, embedding.ovectors,
                               iword2, owords2, nwords2, niword2,
                               chunk_b=8, max_tile_b=8))
    expected2 = _reference_loss(embedding.forward_i(iword2),
                                embedding.forward_o(owords2),
                                embedding.forward_o(nwords2),
                                embedding.forward_i(niword2))
    assert np.allclose(np.asarray(loss2), np.asarray(expected2), rtol=1e-5, atol=1e-5)

    # Check 3: multi-chunk double-buffered pipeline inside a tile
    # (B=40, chunk=8, tile=32 -> 4 chunks/tile, 2 tiles, padded tail).
    batch3 = 40
    iword3 = jax.random.randint(k_i3, (batch3,), 0, vocab_size)
    owords3 = jax.random.randint(k_o3, (batch3,), 0, vocab_size)
    nwords3 = jax.random.randint(k_n3, (batch3,), 0, vocab_size)

    loss3 = jax.block_until_ready(
        negative_sampling_loss(embedding.ivectors, embedding.ovectors,
                               iword3, owords3, nwords3, None,
                               chunk_b=8, max_tile_b=32))
    expected3 = _reference_loss(embedding.forward_i(iword3),
                                embedding.forward_o(owords3),
                                embedding.forward_o(nwords3))
    assert np.allclose(np.asarray(loss3), np.asarray(expected3), rtol=1e-5, atol=1e-5)

    print("KERNEL_OK")
</pallas_src>

<mosaic_0001>
module attributes {stable_mosaic.version = 11 : i64} {
  func.func @kernel(%arg0: i32, %arg1: memref<8xi32, #tpu.memory_space<smem>>, %arg2: memref<8xi32, #tpu.memory_space<smem>>, %arg3: memref<8xi32, #tpu.memory_space<smem>>, %arg4: memref<64x128xf32, #tpu.memory_space<any>>, %arg5: memref<64x128xf32, #tpu.memory_space<any>>, %arg6: memref<1x8x128xf32, #tpu.memory_space<vmem>>, %arg7: memref<2x8x128xf32, #tpu.memory_space<vmem>>, %arg8: memref<2x8x128xf32, #tpu.memory_space<vmem>>, %arg9: memref<2x8x128xf32, #tpu.memory_space<vmem>>, %arg10: memref<3x2x!tpu.dma_semaphore, #tpu.memory_space<semaphore_mem>>) attributes {dimension_semantics = [#tpu.dimension_semantics<parallel>], iteration_bounds = array<i64: 1>, scalar_prefetch = 3 : i64, scratch_operands = 4 : i64, tpu.core_type = #tpu.core_type<tc>, window_params = [{}, {}, {transform_indices = @transform_2, window_bounds = array<i64: 1, 8, 128>}]} {
    %c8_i32 = arith.constant 8 : i32
    %0 = arith.muli %arg0, %c8_i32 : i32
    %c0_i32 = arith.constant 0 : i32
    %1 = arith.addi %0, %c0_i32 : i32
    %c0_i32_0 = arith.constant 0 : i32
    %2 = arith.addi %1, %c0_i32_0 : i32
    %3 = arith.index_cast %2 : i32 to index
    %4 = memref.load %arg1[%3] : memref<8xi32, #tpu.memory_space<smem>>
    %c0_i32_1 = arith.constant 0 : i32
    %c0_i32_2 = arith.constant 0 : i32
    %c0_i32_3 = arith.constant 0 : i32
    %c0_i32_4 = arith.constant 0 : i32
    %5 = tpu.memref_slice %arg4[%4, %c0_i32_4] : memref<64x128xf32, #tpu.memory_space<any>> -> memref<1x128xf32, #tpu.memory_space<any>>
    %c0_i32_5 = arith.constant 0 : i32
    %6 = tpu.memref_slice %arg7[%c0_i32_1, %c0_i32_0, %c0_i32_5] : memref<2x8x128xf32, #tpu.memory_space<vmem>> -> memref<1x1x128xf32, #tpu.memory_space<vmem>>
    %7 = tpu.memref_squeeze %6 : memref<1x1x128xf32, #tpu.memory_space<vmem>> -> memref<1x128xf32, #tpu.memory_space<vmem>>
    %8 = tpu.memref_slice %arg10[%c0_i32_2, %c0_i32_3] : memref<3x2x!tpu.dma_semaphore, #tpu.memory_space<semaphore_mem>> -> memref<1x1x!tpu.dma_semaphore, #tpu.memory_space<semaphore_mem>>
    %9 = tpu.memref_squeeze %8 : memref<1x1x!tpu.dma_semaphore, #tpu.memory_space<semaphore_mem>> -> memref<!tpu.dma_semaphore, #tpu.memory_space<semaphore_mem>>
    tpu.enqueue_dma source(%5 : memref<1x128xf32, #tpu.memory_space<any>>) target(%7 : memref<1x128xf32, #tpu.memory_space<vmem>>) target_semaphore(%9 : memref<!tpu.dma_semaphore, #tpu.memory_space<semaphore_mem>>)
    %10 = arith.index_cast %2 : i32 to index
    %11 = memref.load %arg2[%10] : memref<8xi32, #tpu.memory_space<smem>>
    %c0_i32_6 = arith.constant 0 : i32
    %c1_i32 = arith.constant 1 : i32
    %c0_i32_7 = arith.constant 0 : i32
    %c0_i32_8 = arith.constant 0 : i32
    %12 = tpu.memref_slice %arg5[%11, %c0_i32_8] : memref<64x128xf32, #tpu.memory_space<any>> -> memref<1x128xf32, #tpu.memory_space<any>>
    %c0_i32_9 = arith.constant 0 : i32
    %13 = tpu.memref_slice %arg8[%c0_i32_6, %c0_i32_0, %c0_i32_9] : memref<2x8x128xf32, #tpu.memory_space<vmem>> -> memref<1x1x128xf32, #tpu.memory_space<vmem>>
    %14 = tpu.memref_squeeze %13 : memref<1x1x128xf32, #tpu.memory_space<vmem>> -> memref<1x128xf32, #tpu.memory_space<vmem>>
    %15 = tpu.memref_slice %arg10[%c1_i32, %c0_i32_7] : memref<3x2x!tpu.dma_semaphore, #tpu.memory_space<semaphore_mem>> -> memref<1x1x!tpu.dma_semaphore, #tpu.memory_space<semaphore_mem>>
    %16 = tpu.memref_squeeze %15 : memref<1x1x!tpu.dma_semaphore, #tpu.memory_space<semaphore_mem>> -> memref<!tpu.dma_semaphore, #tpu.memory_space<semaphore_mem>>
    tpu.enqueue_dma source(%12 : memref<1x128xf32, #tpu.memory_space<any>>) target(%14 : memref<1x128xf32, #tpu.memory_space<vmem>>) target_semaphore(%16 : memref<!tpu.dma_semaphore, #tpu.memory_space<semaphore_mem>>)
    %17 = arith.index_cast %2 : i32 to index
    %18 = memref.load %arg3[%17] : memref<8xi32, #tpu.memory_space<smem>>
    %c0_i32_10 = arith.constant 0 : i32
    %c2_i32 = arith.constant 2 : i32
    %c0_i32_11 = arith.constant 0 : i32
    %c0_i32_12 = arith.constant 0 : i32
    %19 = tpu.memref_slice %arg5[%18, %c0_i32_12] : memref<64x128xf32, #tpu.memory_space<any>> -> memref<1x128xf32, #tpu.memory_space<any>>
    %c0_i32_13 = arith.constant 0 : i32
    %20 = tpu.memref_slice %arg9[%c0_i32_10, %c0_i32_0, %c0_i32_13] : memref<2x8x128xf32, #tpu.memory_space<vmem>> -> memref<1x1x128xf32, #tpu.memory_space<vmem>>
    %21 = tpu.memref_squeeze %20 : memref<1x1x128xf32, #tpu.memory_space<vmem>> -> memref<1x128xf32, #tpu.memory_space<vmem>>
    %22 = tpu.memref_slice %arg10[%c2_i32, %c0_i32_11] : memref<3x2x!tpu.dma_semaphore, #tpu.memory_space<semaphore_mem>> -> memref<1x1x!tpu.dma_semaphore, #tpu.memory_space<semaphore_mem>>
    %23 = tpu.memref_squeeze %22 : memref<1x1x!tpu.dma_semaphore, #tpu.memory_space<semaphore_mem>> -> memref<!tpu.dma_semaphore, #tpu.memory_space<semaphore_mem>>
    tpu.enqueue_dma source(%19 : memref<1x128xf32, #tpu.memory_space<any>>) target(%21 : memref<1x128xf32, #tpu.memory_space<vmem>>) target_semaphore(%23 : memref<!tpu.dma_semaphore, #tpu.memory_space<semaphore_mem>>)
    %c1_i32_14 = arith.constant 1 : i32
    %24 = arith.addi %1, %c1_i32_14 : i32
    %25 = arith.index_cast %24 : i32 to index
    %26 = memref.load %arg1[%25] : memref<8xi32, #tpu.memory_space<smem>>
    %c0_i32_15 = arith.constant 0 : i32
    %c0_i32_16 = arith.constant 0 : i32
    %c0_i32_17 = arith.constant 0 : i32
    %c0_i32_18 = arith.constant 0 : i32
    %27 = tpu.memref_slice %arg4[%26, %c0_i32_18] : memref<64x128xf32, #tpu.memory_space<any>> -> memref<1x128xf32, #tpu.memory_space<any>>
    %c0_i32_19 = arith.constant 0 : i32
    %28 = tpu.memref_slice %arg7[%c0_i32_15, %c1_i32_14, %c0_i32_19] : memref<2x8x128xf32, #tpu.memory_space<vmem>> -> memref<1x1x128xf32, #tpu.memory_space<vmem>>
    %29 = tpu.memref_squeeze %28 : memref<1x1x128xf32, #tpu.memory_space<vmem>> -> memref<1x128xf32, #tpu.memory_space<vmem>>
    %30 = tpu.memref_slice %arg10[%c0_i32_16, %c0_i32_17] : memref<3x2x!tpu.dma_semaphore, #tpu.memory_space<semaphore_mem>> -> memref<1x1x!tpu.dma_semaphore, #tpu.memory_space<semaphore_mem>>
    %31 = tpu.memref_squeeze %30 : memref<1x1x!tpu.dma_semaphore, #tpu.memory_space<semaphore_mem>> -> memref<!tpu.dma_semaphore, #tpu.memory_space<semaphore_mem>>
    tpu.enqueue_dma source(%27 : memref<1x128xf32, #tpu.memory_space<any>>) target(%29 : memref<1x128xf32, #tpu.memory_space<vmem>>) target_semaphore(%31 : memref<!tpu.dma_semaphore, #tpu.memory_space<semaphore_mem>>)
    %32 = arith.index_cast %24 : i32 to index
    %33 = memref.load %arg2[%32] : memref<8xi32, #tpu.memory_space<smem>>
    %c0_i32_20 = arith.constant 0 : i32
    %c1_i32_21 = arith.constant 1 : i32
    %c0_i32_22 = arith.constant 0 : i32
    %c0_i32_23 = arith.constant 0 : i32
    %34 = tpu.memref_slice %arg5[%33, %c0_i32_23] : memref<64x128xf32, #tpu.memory_space<any>> -> memref<1x128xf32, #tpu.memory_space<any>>
    %c0_i32_24 = arith.constant 0 : i32
    %35 = tpu.memref_slice %arg8[%c0_i32_20, %c1_i32_14, %c0_i32_24] : memref<2x8x128xf32, #tpu.memory_space<vmem>> -> memref<1x1x128xf32, #tpu.memory_space<vmem>>
    %36 = tpu.memref_squeeze %35 : memref<1x1x128xf32, #tpu.memory_space<vmem>> -> memref<1x128xf32, #tpu.memory_space<vmem>>
    %37 = tpu.memref_slice %arg10[%c1_i32_21, %c0_i32_22] : memref<3x2x!tpu.dma_semaphore, #tpu.memory_space<semaphore_mem>> -> memref<1x1x!tpu.dma_semaphore, #tpu.memory_space<semaphore_mem>>
    %38 = tpu.memref_squeeze %37 : memref<1x1x!tpu.dma_semaphore, #tpu.memory_space<semaphore_mem>> -> memref<!tpu.dma_semaphore, #tpu.memory_space<semaphore_mem>>
    tpu.enqueue_dma source(%34 : memref<1x128xf32, #tpu.memory_space<any>>) target(%36 : memref<1x128xf32, #tpu.memory_space<vmem>>) target_semaphore(%38 : memref<!tpu.dma_semaphore, #tpu.memory_space<semaphore_mem>>)
    %39 = arith.index_cast %24 : i32 to index
    %40 = memref.load %arg3[%39] : memref<8xi32, #tpu.memory_space<smem>>
    %c0_i32_25 = arith.constant 0 : i32
    %c2_i32_26 = arith.constant 2 : i32
    %c0_i32_27 = arith.constant 0 : i32
    %c0_i32_28 = arith.constant 0 : i32
    %41 = tpu.memref_slice %arg5[%40, %c0_i32_28] : memref<64x128xf32, #tpu.memory_space<any>> -> memref<1x128xf32, #tpu.memory_space<any>>
    %c0_i32_29 = arith.constant 0 : i32
    %42 = tpu.memref_slice %arg9[%c0_i32_25, %c1_i32_14, %c0_i32_29] : memref<2x8x128xf32, #tpu.memory_space<vmem>> -> memref<1x1x128xf32, #tpu.memory_space<vmem>>
    %43 = tpu.memref_squeeze %42 : memref<1x1x128xf32, #tpu.memory_space<vmem>> -> memref<1x128xf32, #tpu.memory_space<vmem>>
    %44 = tpu.memref_slice %arg10[%c2_i32_26, %c0_i32_27] : memref<3x2x!tpu.dma_semaphore, #tpu.memory_space<semaphore_mem>> -> memref<1x1x!tpu.dma_semaphore, #tpu.memory_space<semaphore_mem>>
    %45 = tpu.memref_squeeze %44 : memref<1x1x!tpu.dma_semaphore, #tpu.memory_space<semaphore_mem>> -> memref<!tpu.dma_semaphore, #tpu.memory_space<semaphore_mem>>
    tpu.enqueue_dma source(%41 : memref<1x128xf32, #tpu.memory_space<any>>) target(%43 : memref<1x128xf32, #tpu.memory_space<vmem>>) target_semaphore(%45 : memref<!tpu.dma_semaphore, #tpu.memory_space<semaphore_mem>>)
    %c2_i32_30 = arith.constant 2 : i32
    %46 = arith.addi %1, %c2_i32_30 : i32
    %47 = arith.index_cast %46 : i32 to index
    %48 = memref.load %arg1[%47] : memref<8xi32, #tpu.memory_space<smem>>
    %c0_i32_31 = arith.constant 0 : i32
    %c0_i32_32 = arith.constant 0 : i32
    %c0_i32_33 = arith.constant 0 : i32
    %c0_i32_34 = arith.constant 0 : i32
    %49 = tpu.memref_slice %arg4[%48, %c0_i32_34] : memref<64x128xf32, #tpu.memory_space<any>> -> memref<1x128xf32, #tpu.memory_space<any>>
    %c0_i32_35 = arith.constant 0 : i32
    %50 = tpu.memref_slice %arg7[%c0_i32_31, %c2_i32_30, %c0_i32_35] : memref<2x8x128xf32, #tpu.memory_space<vmem>> -> memref<1x1x128xf32, #tpu.memory_space<vmem>>
    %51 = tpu.memref_squeeze %50 : memref<1x1x128xf32, #tpu.memory_space<vmem>> -> memref<1x128xf32, #tpu.memory_space<vmem>>
    %52 = tpu.memref_slice %arg10[%c0_i32_32, %c0_i32_33] : memref<3x2x!tpu.dma_semaphore, #tpu.memory_space<semaphore_mem>> -> memref<1x1x!tpu.dma_semaphore, #tpu.memory_space<semaphore_mem>>
    %53 = tpu.memref_squeeze %52 : memref<1x1x!tpu.dma_semaphore, #tpu.memory_space<semaphore_mem>> -> memref<!tpu.dma_semaphore, #tpu.memory_space<semaphore_mem>>
    tpu.enqueue_dma source(%49 : memref<1x128xf32, #tpu.memory_space<any>>) target(%51 : memref<1x128xf32, #tpu.memory_space<vmem>>) target_semaphore(%53 : memref<!tpu.dma_semaphore, #tpu.memory_space<semaphore_mem>>)
    %54 = arith.index_cast %46 : i32 to index
    %55 = memref.load %arg2[%54] : memref<8xi32, #tpu.memory_space<smem>>
    %c0_i32_36 = arith.constant 0 : i32
    %c1_i32_37 = arith.constant 1 : i32
    %c0_i32_38 = arith.constant 0 : i32
    %c0_i32_39 = arith.constant 0 : i32
    %56 = tpu.memref_slice %arg5[%55, %c0_i32_39] : memref<64x128xf32, #tpu.memory_space<any>> -> memref<1x128xf32, #tpu.memory_space<any>>
    %c0_i32_40 = arith.constant 0 : i32
    %57 = tpu.memref_slice %arg8[%c0_i32_36, %c2_i32_30, %c0_i32_40] : memref<2x8x128xf32, #tpu.memory_space<vmem>> -> memref<1x1x128xf32, #tpu.memory_space<vmem>>
    %58 = tpu.memref_squeeze %57 : memref<1x1x128xf32, #tpu.memory_space<vmem>> -> memref<1x128xf32, #tpu.memory_space<vmem>>
    %59 = tpu.memref_slice %arg10[%c1_i32_37, %c0_i32_38] : memref<3x2x!tpu.dma_semaphore, #tpu.memory_space<semaphore_mem>> -> memref<1x1x!tpu.dma_semaphore, #tpu.memory_space<semaphore_mem>>
    %60 = tpu.memref_squeeze %59 : memref<1x1x!tpu.dma_semaphore, #tpu.memory_space<semaphore_mem>> -> memref<!tpu.dma_semaphore, #tpu.memory_space<semaphore_mem>>
    tpu.enqueue_dma source(%56 : memref<1x128xf32, #tpu.memory_space<any>>) target(%58 : memref<1x128xf32, #tpu.memory_space<vmem>>) target_semaphore(%60 : memref<!tpu.dma_semaphore, #tpu.memory_space<semaphore_mem>>)
    %61 = arith.index_cast %46 : i32 to index
    %62 = memref.load %arg3[%61] : memref<8xi32, #tpu.memory_space<smem>>
    %c0_i32_41 = arith.constant 0 : i32
    %c2_i32_42 = arith.constant 2 : i32
    %c0_i32_43 = arith.constant 0 : i32
    %c0_i32_44 = arith.constant 0 : i32
    %63 = tpu.memref_slice %arg5[%62, %c0_i32_44] : memref<64x128xf32, #tpu.memory_space<any>> -> memref<1x128xf32, #tpu.memory_space<any>>
    %c0_i32_45 = arith.constant 0 : i32
    %64 = tpu.memref_slice %arg9[%c0_i32_41, %c2_i32_30, %c0_i32_45] : memref<2x8x128xf32, #tpu.memory_space<vmem>> -> memref<1x1x128xf32, #tpu.memory_space<vmem>>
    %65 = tpu.memref_squeeze %64 : memref<1x1x128xf32, #tpu.memory_space<vmem>> -> memref<1x128xf32, #tpu.memory_space<vmem>>
    %66 = tpu.memref_slice %arg10[%c2_i32_42, %c0_i32_43] : memref<3x2x!tpu.dma_semaphore, #tpu.memory_space<semaphore_mem>> -> memref<1x1x!tpu.dma_semaphore, #tpu.memory_space<semaphore_mem>>
    %67 = tpu.memref_squeeze %66 : memref<1x1x!tpu.dma_semaphore, #tpu.memory_space<semaphore_mem>> -> memref<!tpu.dma_semaphore, #tpu.memory_space<semaphore_mem>>
    tpu.enqueue_dma source(%63 : memref<1x128xf32, #tpu.memory_space<any>>) target(%65 : memref<1x128xf32, #tpu.memory_space<vmem>>) target_semaphore(%67 : memref<!tpu.dma_semaphore, #tpu.memory_space<semaphore_mem>>)
    %c3_i32 = arith.constant 3 : i32
    %68 = arith.addi %1, %c3_i32 : i32
    %69 = arith.index_cast %68 : i32 to index
    %70 = memref.load %arg1[%69] : memref<8xi32, #tpu.memory_space<smem>>
    %c0_i32_46 = arith.constant 0 : i32
    %c0_i32_47 = arith.constant 0 : i32
    %c0_i32_48 = arith.constant 0 : i32
    %c0_i32_49 = arith.constant 0 : i32
    %71 = tpu.memref_slice %arg4[%70, %c0_i32_49] : memref<64x128xf32, #tpu.memory_space<any>> -> memref<1x128xf32, #tpu.memory_space<any>>
    %c0_i32_50 = arith.constant 0 : i32
    %72 = tpu.memref_slice %arg7[%c0_i32_46, %c3_i32, %c0_i32_50] : memref<2x8x128xf32, #tpu.memory_space<vmem>> -> memref<1x1x128xf32, #tpu.memory_space<vmem>>
    %73 = tpu.memref_squeeze %72 : memref<1x1x128xf32, #tpu.memory_space<vmem>> -> memref<1x128xf32, #tpu.memory_space<vmem>>
    %74 = tpu.memref_slice %arg10[%c0_i32_47, %c0_i32_48] : memref<3x2x!tpu.dma_semaphore, #tpu.memory_space<semaphore_mem>> -> memref<1x1x!tpu.dma_semaphore, #tpu.memory_space<semaphore_mem>>
    %75 = tpu.memref_squeeze %74 : memref<1x1x!tpu.dma_semaphore, #tpu.memory_space<semaphore_mem>> -> memref<!tpu.dma_semaphore, #tpu.memory_space<semaphore_mem>>
    tpu.enqueue_dma source(%71 : memref<1x128xf32, #tpu.memory_space<any>>) target(%73 : memref<1x128xf32, #tpu.memory_space<vmem>>) target_semaphore(%75 : memref<!tpu.dma_semaphore, #tpu.memory_space<semaphore_mem>>)
    %76 = arith.index_cast %68 : i32 to index
    %77 = memref.load %arg2[%76] : memref<8xi32, #tpu.memory_space<smem>>
    %c0_i32_51 = arith.constant 0 : i32
    %c1_i32_52 = arith.constant 1 : i32
    %c0_i32_53 = arith.constant 0 : i32
    %c0_i32_54 = arith.constant 0 : i32
    %78 = tpu.memref_slice %arg5[%77, %c0_i32_54] : memref<64x128xf32, #tpu.memory_space<any>> -> memref<1x128xf32, #tpu.memory_space<any>>
    %c0_i32_55 = arith.constant 0 : i32
    %79 = tpu.memref_slice %arg8[%c0_i32_51, %c3_i32, %c0_i32_55] : memref<2x8x128xf32, #tpu.memory_space<vmem>> -> memref<1x1x128xf32, #tpu.memory_space<vmem>>
    %80 = tpu.memref_squeeze %79 : memref<1x1x128xf32, #tpu.memory_space<vmem>> -> memref<1x128xf32, #tpu.memory_space<vmem>>
    %81 = tpu.memref_slice %arg10[%c1_i32_52, %c0_i32_53] : memref<3x2x!tpu.dma_semaphore, #tpu.memory_space<semaphore_mem>> -> memref<1x1x!tpu.dma_semaphore, #tpu.memory_space<semaphore_mem>>
    %82 = tpu.memref_squeeze %81 : memref<1x1x!tpu.dma_semaphore, #tpu.memory_space<semaphore_mem>> -> memref<!tpu.dma_semaphore, #tpu.memory_space<semaphore_mem>>
    tpu.enqueue_dma source(%78 : memref<1x128xf32, #tpu.memory_space<any>>) target(%80 : memref<1x128xf32, #tpu.memory_space<vmem>>) target_semaphore(%82 : memref<!tpu.dma_semaphore, #tpu.memory_space<semaphore_mem>>)
    %83 = arith.index_cast %68 : i32 to index
    %84 = memref.load %arg3[%83] : memref<8xi32, #tpu.memory_space<smem>>
    %c0_i32_56 = arith.constant 0 : i32
    %c2_i32_57 = arith.constant 2 : i32
    %c0_i32_58 = arith.constant 0 : i32
    %c0_i32_59 = arith.constant 0 : i32
    %85 = tpu.memref_slice %arg5[%84, %c0_i32_59] : memref<64x128xf32, #tpu.memory_space<any>> -> memref<1x128xf32, #tpu.memory_space<any>>
    %c0_i32_60 = arith.constant 0 : i32
    %86 = tpu.memref_slice %arg9[%c0_i32_56, %c3_i32, %c0_i32_60] : memref<2x8x128xf32, #tpu.memory_space<vmem>> -> memref<1x1x128xf32, #tpu.memory_space<vmem>>
    %87 = tpu.memref_squeeze %86 : memref<1x1x128xf32, #tpu.memory_space<vmem>> -> memref<1x128xf32, #tpu.memory_space<vmem>>
    %88 = tpu.memref_slice %arg10[%c2_i32_57, %c0_i32_58] : memref<3x2x!tpu.dma_semaphore, #tpu.memory_space<semaphore_mem>> -> memref<1x1x!tpu.dma_semaphore, #tpu.memory_space<semaphore_mem>>
    %89 = tpu.memref_squeeze %88 : memref<1x1x!tpu.dma_semaphore, #tpu.memory_space<semaphore_mem>> -> memref<!tpu.dma_semaphore, #tpu.memory_space<semaphore_mem>>
    tpu.enqueue_dma source(%85 : memref<1x128xf32, #tpu.memory_space<any>>) target(%87 : memref<1x128xf32, #tpu.memory_space<vmem>>) target_semaphore(%89 : memref<!tpu.dma_semaphore, #tpu.memory_space<semaphore_mem>>)
    %c4_i32 = arith.constant 4 : i32
    %90 = arith.addi %1, %c4_i32 : i32
    %91 = arith.index_cast %90 : i32 to index
    %92 = memref.load %arg1[%91] : memref<8xi32, #tpu.memory_space<smem>>
    %c0_i32_61 = arith.constant 0 : i32
    %c0_i32_62 = arith.constant 0 : i32
    %c0_i32_63 = arith.constant 0 : i32
    %c0_i32_64 = arith.constant 0 : i32
    %93 = tpu.memref_slice %arg4[%92, %c0_i32_64] : memref<64x128xf32, #tpu.memory_space<any>> -> memref<1x128xf32, #tpu.memory_space<any>>
    %c0_i32_65 = arith.constant 0 : i32
    %94 = tpu.memref_slice %arg7[%c0_i32_61, %c4_i32, %c0_i32_65] : memref<2x8x128xf32, #tpu.memory_space<vmem>> -> memref<1x1x128xf32, #tpu.memory_space<vmem>>
    %95 = tpu.memref_squeeze %94 : memref<1x1x128xf32, #tpu.memory_space<vmem>> -> memref<1x128xf32, #tpu.memory_space<vmem>>
    %96 = tpu.memref_slice %arg10[%c0_i32_62, %c0_i32_63] : memref<3x2x!tpu.dma_semaphore, #tpu.memory_space<semaphore_mem>> -> memref<1x1x!tpu.dma_semaphore, #tpu.memory_space<semaphore_mem>>
    %97 = tpu.memref_squeeze %96 : memref<1x1x!tpu.dma_semaphore, #tpu.memory_space<semaphore_mem>> -> memref<!tpu.dma_semaphore, #tpu.memory_space<semaphore_mem>>
    tpu.enqueue_dma source(%93 : memref<1x128xf32, #tpu.memory_space<any>>) target(%95 : memref<1x128xf32, #tpu.memory_space<vmem>>) target_semaphore(%97 : memref<!tpu.dma_semaphore, #tpu.memory_space<semaphore_mem>>)
    %98 = arith.index_cast %90 : i32 to index
    %99 = memref.load %arg2[%98] : memref<8xi32, #tpu.memory_space<smem>>
    %c0_i32_66 = arith.constant 0 : i32
    %c1_i32_67 = arith.constant 1 : i32
    %c0_i32_68 = arith.constant 0 : i32
    %c0_i32_69 = arith.constant 0 : i32
    %100 = tpu.memref_slice %arg5[%99, %c0_i32_69] : memref<64x128xf32, #tpu.memory_space<any>> -> memref<1x128xf32, #tpu.memory_space<any>>
    %c0_i32_70 = arith.constant 0 : i32
    %101 = tpu.memref_slice %arg8[%c0_i32_66, %c4_i32, %c0_i32_70] : memref<2x8x128xf32, #tpu.memory_space<vmem>> -> memref<1x1x128xf32, #tpu.memory_space<vmem>>
    %102 = tpu.memref_squeeze %101 : memref<1x1x128xf32, #tpu.memory_space<vmem>> -> memref<1x128xf32, #tpu.memory_space<vmem>>
    %103 = tpu.memref_slice %arg10[%c1_i32_67, %c0_i32_68] : memref<3x2x!tpu.dma_semaphore, #tpu.memory_space<semaphore_mem>> -> memref<1x1x!tpu.dma_semaphore, #tpu.memory_space<semaphore_mem>>
    %104 = tpu.memref_squeeze %103 : memref<1x1x!tpu.dma_semaphore, #tpu.memory_space<semaphore_mem>> -> memref<!tpu.dma_semaphore, #tpu.memory_space<semaphore_mem>>
    tpu.enqueue_dma source(%100 : memref<1x128xf32, #tpu.memory_space<any>>) target(%102 : memref<1x128xf32, #tpu.memory_space<vmem>>) target_semaphore(%104 : memref<!tpu.dma_semaphore, #tpu.memory_space<semaphore_mem>>)
    %105 = arith.index_cast %90 : i32 to index
    %106 = memref.load %arg3[%105] : memref<8xi32, #tpu.memory_space<smem>>
    %c0_i32_71 = arith.constant 0 : i32
    %c2_i32_72 = arith.constant 2 : i32
    %c0_i32_73 = arith.constant 0 : i32
    %c0_i32_74 = arith.constant 0 : i32
    %107 = tpu.memref_slice %arg5[%106, %c0_i32_74] : memref<64x128xf32, #tpu.memory_space<any>> -> memref<1x128xf32, #tpu.memory_space<any>>
    %c0_i32_75 = arith.constant 0 : i32
    %108 = tpu.memref_slice %arg9[%c0_i32_71, %c4_i32, %c0_i32_75] : memref<2x8x128xf32, #tpu.memory_space<vmem>> -> memref<1x1x128xf32, #tpu.memory_space<vmem>>
    %109 = tpu.memref_squeeze %108 : memref<1x1x128xf32, #tpu.memory_space<vmem>> -> memref<1x128xf32, #tpu.memory_space<vmem>>
    %110 = tpu.memref_slice %arg10[%c2_i32_72, %c0_i32_73] : memref<3x2x!tpu.dma_semaphore, #tpu.memory_space<semaphore_mem>> -> memref<1x1x!tpu.dma_semaphore, #tpu.memory_space<semaphore_mem>>
    %111 = tpu.memref_squeeze %110 : memref<1x1x!tpu.dma_semaphore, #tpu.memory_space<semaphore_mem>> -> memref<!tpu.dma_semaphore, #tpu.memory_space<semaphore_mem>>
    tpu.enqueue_dma source(%107 : memref<1x128xf32, #tpu.memory_space<any>>) target(%109 : memref<1x128xf32, #tpu.memory_space<vmem>>) target_semaphore(%111 : memref<!tpu.dma_semaphore, #tpu.memory_space<semaphore_mem>>)
    %c5_i32 = arith.constant 5 : i32
    %112 = arith.addi %1, %c5_i32 : i32
    %113 = arith.index_cast %112 : i32 to index
    %114 = memref.load %arg1[%113] : memref<8xi32, #tpu.memory_space<smem>>
    %c0_i32_76 = arith.constant 0 : i32
    %c0_i32_77 = arith.constant 0 : i32
    %c0_i32_78 = arith.constant 0 : i32
    %c0_i32_79 = arith.constant 0 : i32
    %115 = tpu.memref_slice %arg4[%114, %c0_i32_79] : memref<64x128xf32, #tpu.memory_space<any>> -> memref<1x128xf32, #tpu.memory_space<any>>
    %c0_i32_80 = arith.constant 0 : i32
    %116 = tpu.memref_slice %arg7[%c0_i32_76, %c5_i32, %c0_i32_80] : memref<2x8x128xf32, #tpu.memory_space<vmem>> -> memref<1x1x128xf32, #tpu.memory_space<vmem>>
    %117 = tpu.memref_squeeze %116 : memref<1x1x128xf32, #tpu.memory_space<vmem>> -> memref<1x128xf32, #tpu.memory_space<vmem>>
    %118 = tpu.memref_slice %arg10[%c0_i32_77, %c0_i32_78] : memref<3x2x!tpu.dma_semaphore, #tpu.memory_space<semaphore_mem>> -> memref<1x1x!tpu.dma_semaphore, #tpu.memory_space<semaphore_mem>>
    %119 = tpu.memref_squeeze %118 : memref<1x1x!tpu.dma_semaphore, #tpu.memory_space<semaphore_mem>> -> memref<!tpu.dma_semaphore, #tpu.memory_space<semaphore_mem>>
    tpu.enqueue_dma source(%115 : memref<1x128xf32, #tpu.memory_space<any>>) target(%117 : memref<1x128xf32, #tpu.memory_space<vmem>>) target_semaphore(%119 : memref<!tpu.dma_semaphore, #tpu.memory_space<semaphore_mem>>)
    %120 = arith.index_cast %112 : i32 to index
    %121 = memref.load %arg2[%120] : memref<8xi32, #tpu.memory_space<smem>>
    %c0_i32_81 = arith.constant 0 : i32
    %c1_i32_82 = arith.constant 1 : i32
    %c0_i32_83 = arith.constant 0 : i32
    %c0_i32_84 = arith.constant 0 : i32
    %122 = tpu.memref_slice %arg5[%121, %c0_i32_84] : memref<64x128xf32, #tpu.memory_space<any>> -> memref<1x128xf32, #tpu.memory_space<any>>
    %c0_i32_85 = arith.constant 0 : i32
    %123 = tpu.memref_slice %arg8[%c0_i32_81, %c5_i32, %c0_i32_85] : memref<2x8x128xf32, #tpu.memory_space<vmem>> -> memref<1x1x128xf32, #tpu.memory_space<vmem>>
    %124 = tpu.memref_squeeze %123 : memref<1x1x128xf32, #tpu.memory_space<vmem>> -> memref<1x128xf32, #tpu.memory_space<vmem>>
    %125 = tpu.memref_slice %arg10[%c1_i32_82, %c0_i32_83] : memref<3x2x!tpu.dma_semaphore, #tpu.memory_space<semaphore_mem>> -> memref<1x1x!tpu.dma_semaphore, #tpu.memory_space<semaphore_mem>>
    %126 = tpu.memref_squeeze %125 : memref<1x1x!tpu.dma_semaphore, #tpu.memory_space<semaphore_mem>> -> memref<!tpu.dma_semaphore, #tpu.memory_space<semaphore_mem>>
    tpu.enqueue_dma source(%122 : memref<1x128xf32, #tpu.memory_space<any>>) target(%124 : memref<1x128xf32, #tpu.memory_space<vmem>>) target_semaphore(%126 : memref<!tpu.dma_semaphore, #tpu.memory_space<semaphore_mem>>)
    %127 = arith.index_cast %112 : i32 to index
    %128 = memref.load %arg3[%127] : memref<8xi32, #tpu.memory_space<smem>>
    %c0_i32_86 = arith.constant 0 : i32
    %c2_i32_87 = arith.constant 2 : i32
    %c0_i32_88 = arith.constant 0 : i32
    %c0_i32_89 = arith.constant 0 : i32
    %129 = tpu.memref_slice %arg5[%128, %c0_i32_89] : memref<64x128xf32, #tpu.memory_space<any>> -> memref<1x128xf32, #tpu.memory_space<any>>
    %c0_i32_90 = arith.constant 0 : i32
    %130 = tpu.memref_slice %arg9[%c0_i32_86, %c5_i32, %c0_i32_90] : memref<2x8x128xf32, #tpu.memory_space<vmem>> -> memref<1x1x128xf32, #tpu.memory_space<vmem>>
    %131 = tpu.memref_squeeze %130 : memref<1x1x128xf32, #tpu.memory_space<vmem>> -> memref<1x128xf32, #tpu.memory_space<vmem>>
    %132 = tpu.memref_slice %arg10[%c2_i32_87, %c0_i32_88] : memref<3x2x!tpu.dma_semaphore, #tpu.memory_space<semaphore_mem>> -> memref<1x1x!tpu.dma_semaphore, #tpu.memory_space<semaphore_mem>>
    %133 = tpu.memref_squeeze %132 : memref<1x1x!tpu.dma_semaphore, #tpu.memory_space<semaphore_mem>> -> memref<!tpu.dma_semaphore, #tpu.memory_space<semaphore_mem>>
    tpu.enqueue_dma source(%129 : memref<1x128xf32, #tpu.memory_space<any>>) target(%131 : memref<1x128xf32, #tpu.memory_space<vmem>>) target_semaphore(%133 : memref<!tpu.dma_semaphore, #tpu.memory_space<semaphore_mem>>)
    %c6_i32 = arith.constant 6 : i32
    %134 = arith.addi %1, %c6_i32 : i32
    %135 = arith.index_cast %134 : i32 to index
    %136 = memref.load %arg1[%135] : memref<8xi32, #tpu.memory_space<smem>>
    %c0_i32_91 = arith.constant 0 : i32
    %c0_i32_92 = arith.constant 0 : i32
    %c0_i32_93 = arith.constant 0 : i32
    %c0_i32_94 = arith.constant 0 : i32
    %137 = tpu.memref_slice %arg4[%136, %c0_i32_94] : memref<64x128xf32, #tpu.memory_space<any>> -> memref<1x128xf32, #tpu.memory_space<any>>
    %c0_i32_95 = arith.constant 0 : i32
    %138 = tpu.memref_slice %arg7[%c0_i32_91, %c6_i32, %c0_i32_95] : memref<2x8x128xf32, #tpu.memory_space<vmem>> -> memref<1x1x128xf32, #tpu.memory_space<vmem>>
    %139 = tpu.memref_squeeze %138 : memref<1x1x128xf32, #tpu.memory_space<vmem>> -> memref<1x128xf32, #tpu.memory_space<vmem>>
    %140 = tpu.memref_slice %arg10[%c0_i32_92, %c0_i32_93] : memref<3x2x!tpu.dma_semaphore, #tpu.memory_space<semaphore_mem>> -> memref<1x1x!tpu.dma_semaphore, #tpu.memory_space<semaphore_mem>>
    %141 = tpu.memref_squeeze %140 : memref<1x1x!tpu.dma_semaphore, #tpu.memory_space<semaphore_mem>> -> memref<!tpu.dma_semaphore, #tpu.memory_space<semaphore_mem>>
    tpu.enqueue_dma source(%137 : memref<1x128xf32, #tpu.memory_space<any>>) target(%139 : memref<1x128xf32, #tpu.memory_space<vmem>>) target_semaphore(%141 : memref<!tpu.dma_semaphore, #tpu.memory_space<semaphore_mem>>)
    %142 = arith.index_cast %134 : i32 to index
    %143 = memref.load %arg2[%142] : memref<8xi32, #tpu.memory_space<smem>>
    %c0_i32_96 = arith.constant 0 : i32
    %c1_i32_97 = arith.constant 1 : i32
    %c0_i32_98 = arith.constant 0 : i32
    %c0_i32_99 = arith.constant 0 : i32
    %144 = tpu.memref_slice %arg5[%143, %c0_i32_99] : memref<64x128xf32, #tpu.memory_space<any>> -> memref<1x128xf32, #tpu.memory_space<any>>
    %c0_i32_100 = arith.constant 0 : i32
    %145 = tpu.memref_slice %arg8[%c0_i32_96, %c6_i32, %c0_i32_100] : memref<2x8x128xf32, #tpu.memory_space<vmem>> -> memref<1x1x128xf32, #tpu.memory_space<vmem>>
    %146 = tpu.memref_squeeze %145 : memref<1x1x128xf32, #tpu.memory_space<vmem>> -> memref<1x128xf32, #tpu.memory_space<vmem>>
    %147 = tpu.memref_slice %arg10[%c1_i32_97, %c0_i32_98] : memref<3x2x!tpu.dma_semaphore, #tpu.memory_space<semaphore_mem>> -> memref<1x1x!tpu.dma_semaphore, #tpu.memory_space<semaphore_mem>>
    %148 = tpu.memref_squeeze %147 : memref<1x1x!tpu.dma_semaphore, #tpu.memory_space<semaphore_mem>> -> memref<!tpu.dma_semaphore, #tpu.memory_space<semaphore_mem>>
    tpu.enqueue_dma source(%144 : memref<1x128xf32, #tpu.memory_space<any>>) target(%146 : memref<1x128xf32, #tpu.memory_space<vmem>>) target_semaphore(%148 : memref<!tpu.dma_semaphore, #tpu.memory_space<semaphore_mem>>)
    %149 = arith.index_cast %134 : i32 to index
    %150 = memref.load %arg3[%149] : memref<8xi32, #tpu.memory_space<smem>>
    %c0_i32_101 = arith.constant 0 : i32
    %c2_i32_102 = arith.constant 2 : i32
    %c0_i32_103 = arith.constant 0 : i32
    %c0_i32_104 = arith.constant 0 : i32
    %151 = tpu.memref_slice %arg5[%150, %c0_i32_104] : memref<64x128xf32, #tpu.memory_space<any>> -> memref<1x128xf32, #tpu.memory_space<any>>
    %c0_i32_105 = arith.constant 0 : i32
    %152 = tpu.memref_slice %arg9[%c0_i32_101, %c6_i32, %c0_i32_105] : memref<2x8x128xf32, #tpu.memory_space<vmem>> -> memref<1x1x128xf32, #tpu.memory_space<vmem>>
    %153 = tpu.memref_squeeze %152 : memref<1x1x128xf32, #tpu.memory_space<vmem>> -> memref<1x128xf32, #tpu.memory_space<vmem>>
    %154 = tpu.memref_slice %arg10[%c2_i32_102, %c0_i32_103] : memref<3x2x!tpu.dma_semaphore, #tpu.memory_space<semaphore_mem>> -> memref<1x1x!tpu.dma_semaphore, #tpu.memory_space<semaphore_mem>>
    %155 = tpu.memref_squeeze %154 : memref<1x1x!tpu.dma_semaphore, #tpu.memory_space<semaphore_mem>> -> memref<!tpu.dma_semaphore, #tpu.memory_space<semaphore_mem>>
    tpu.enqueue_dma source(%151 : memref<1x128xf32, #tpu.memory_space<any>>) target(%153 : memref<1x128xf32, #tpu.memory_space<vmem>>) target_semaphore(%155 : memref<!tpu.dma_semaphore, #tpu.memory_space<semaphore_mem>>)
    %c7_i32 = arith.constant 7 : i32
    %156 = arith.addi %1, %c7_i32 : i32
    %157 = arith.index_cast %156 : i32 to index
    %158 = memref.load %arg1[%157] : memref<8xi32, #tpu.memory_space<smem>>
    %c0_i32_106 = arith.constant 0 : i32
    %c0_i32_107 = arith.constant 0 : i32
    %c0_i32_108 = arith.constant 0 : i32
    %c0_i32_109 = arith.constant 0 : i32
    %159 = tpu.memref_slice %arg4[%158, %c0_i32_109] : memref<64x128xf32, #tpu.memory_space<any>> -> memref<1x128xf32, #tpu.memory_space<any>>
    %c0_i32_110 = arith.constant 0 : i32
    %160 = tpu.memref_slice %arg7[%c0_i32_106, %c7_i32, %c0_i32_110] : memref<2x8x128xf32, #tpu.memory_space<vmem>> -> memref<1x1x128xf32, #tpu.memory_space<vmem>>
    %161 = tpu.memref_squeeze %160 : memref<1x1x128xf32, #tpu.memory_space<vmem>> -> memref<1x128xf32, #tpu.memory_space<vmem>>
    %162 = tpu.memref_slice %arg10[%c0_i32_107, %c0_i32_108] : memref<3x2x!tpu.dma_semaphore, #tpu.memory_space<semaphore_mem>> -> memref<1x1x!tpu.dma_semaphore, #tpu.memory_space<semaphore_mem>>
    %163 = tpu.memref_squeeze %162 : memref<1x1x!tpu.dma_semaphore, #tpu.memory_space<semaphore_mem>> -> memref<!tpu.dma_semaphore, #tpu.memory_space<semaphore_mem>>
    tpu.enqueue_dma source(%159 : memref<1x128xf32, #tpu.memory_space<any>>) target(%161 : memref<1x128xf32, #tpu.memory_space<vmem>>) target_semaphore(%163 : memref<!tpu.dma_semaphore, #tpu.memory_space<semaphore_mem>>)
    %164 = arith.index_cast %156 : i32 to index
    %165 = memref.load %arg2[%164] : memref<8xi32, #tpu.memory_space<smem>>
    %c0_i32_111 = arith.constant 0 : i32
    %c1_i32_112 = arith.constant 1 : i32
    %c0_i32_113 = arith.constant 0 : i32
    %c0_i32_114 = arith.constant 0 : i32
    %166 = tpu.memref_slice %arg5[%165, %c0_i32_114] : memref<64x128xf32, #tpu.memory_space<any>> -> memref<1x128xf32, #tpu.memory_space<any>>
    %c0_i32_115 = arith.constant 0 : i32
    %167 = tpu.memref_slice %arg8[%c0_i32_111, %c7_i32, %c0_i32_115] : memref<2x8x128xf32, #tpu.memory_space<vmem>> -> memref<1x1x128xf32, #tpu.memory_space<vmem>>
    %168 = tpu.memref_squeeze %167 : memref<1x1x128xf32, #tpu.memory_space<vmem>> -> memref<1x128xf32, #tpu.memory_space<vmem>>
    %169 = tpu.memref_slice %arg10[%c1_i32_112, %c0_i32_113] : memref<3x2x!tpu.dma_semaphore, #tpu.memory_space<semaphore_mem>> -> memref<1x1x!tpu.dma_semaphore, #tpu.memory_space<semaphore_mem>>
    %170 = tpu.memref_squeeze %169 : memref<1x1x!tpu.dma_semaphore, #tpu.memory_space<semaphore_mem>> -> memref<!tpu.dma_semaphore, #tpu.memory_space<semaphore_mem>>
    tpu.enqueue_dma source(%166 : memref<1x128xf32, #tpu.memory_space<any>>) target(%168 : memref<1x128xf32, #tpu.memory_space<vmem>>) target_semaphore(%170 : memref<!tpu.dma_semaphore, #tpu.memory_space<semaphore_mem>>)
    %171 = arith.index_cast %156 : i32 to index
    %172 = memref.load %arg3[%171] : memref<8xi32, #tpu.memory_space<smem>>
    %c0_i32_116 = arith.constant 0 : i32
    %c2_i32_117 = arith.constant 2 : i32
    %c0_i32_118 = arith.constant 0 : i32
    %c0_i32_119 = arith.constant 0 : i32
    %173 = tpu.memref_slice %arg5[%172, %c0_i32_119] : memref<64x128xf32, #tpu.memory_space<any>> -> memref<1x128xf32, #tpu.memory_space<any>>
    %c0_i32_120 = arith.constant 0 : i32
    %174 = tpu.memref_slice %arg9[%c0_i32_116, %c7_i32, %c0_i32_120] : memref<2x8x128xf32, #tpu.memory_space<vmem>> -> memref<1x1x128xf32, #tpu.memory_space<vmem>>
    %175 = tpu.memref_squeeze %174 : memref<1x1x128xf32, #tpu.memory_space<vmem>> -> memref<1x128xf32, #tpu.memory_space<vmem>>
    %176 = tpu.memref_slice %arg10[%c2_i32_117, %c0_i32_118] : memref<3x2x!tpu.dma_semaphore, #tpu.memory_space<semaphore_mem>> -> memref<1x1x!tpu.dma_semaphore, #tpu.memory_space<semaphore_mem>>
    %177 = tpu.memref_squeeze %176 : memref<1x1x!tpu.dma_semaphore, #tpu.memory_space<semaphore_mem>> -> memref<!tpu.dma_semaphore, #tpu.memory_space<semaphore_mem>>
    tpu.enqueue_dma source(%173 : memref<1x128xf32, #tpu.memory_space<any>>) target(%175 : memref<1x128xf32, #tpu.memory_space<vmem>>) target_semaphore(%177 : memref<!tpu.dma_semaphore, #tpu.memory_space<semaphore_mem>>)
    %c8_i32_121 = arith.constant 8 : i32
    %c1_i32_122 = arith.constant 1 : i32
    %c0_i32_123 = arith.constant 0 : i32
    %c0_i32_124 = arith.constant 0 : i32
    %c0_i32_125 = arith.constant 0 : i32
    %c0_i32_126 = arith.constant 0 : i32
    %c0_i32_127 = arith.constant 0 : i32
    %178 = tpu.memref_slice %arg7[%c1_i32_122, %c0_i32_126, %c0_i32_127] : memref<2x8x128xf32, #tpu.memory_space<vmem>> -> memref<1x8x128xf32, #tpu.memory_space<vmem>>
    %179 = tpu.memref_squeeze %178 : memref<1x8x128xf32, #tpu.memory_space<vmem>> -> memref<8x128xf32, #tpu.memory_space<vmem>>
    %c0_i32_128 = arith.constant 0 : i32
    %c0_i32_129 = arith.constant 0 : i32
    %180 = tpu.memref_slice %arg7[%c0_i32_123, %c0_i32_128, %c0_i32_129] : memref<2x8x128xf32, #tpu.memory_space<vmem>> -> memref<1x8x128xf32, #tpu.memory_space<vmem>>
    %181 = tpu.memref_squeeze %180 : memref<1x8x128xf32, #tpu.memory_space<vmem>> -> memref<8x128xf32, #tpu.memory_space<vmem>>
    %182 = tpu.memref_slice %arg10[%c0_i32_124, %c0_i32_125] : memref<3x2x!tpu.dma_semaphore, #tpu.memory_space<semaphore_mem>> -> memref<1x1x!tpu.dma_semaphore, #tpu.memory_space<semaphore_mem>>
    %183 = tpu.memref_squeeze %182 : memref<1x1x!tpu.dma_semaphore, #tpu.memory_space<semaphore_mem>> -> memref<!tpu.dma_semaphore, #tpu.memory_space<semaphore_mem>>
    tpu.wait_dma2 semaphore(%183 : memref<!tpu.dma_semaphore, #tpu.memory_space<semaphore_mem>>) src(%179 : memref<8x128xf32, #tpu.memory_space<vmem>>) dst(%181 : memref<8x128xf32, #tpu.memory_space<vmem>>)
    %c1_i32_130 = arith.constant 1 : i32
    %c0_i32_131 = arith.constant 0 : i32
    %c1_i32_132 = arith.constant 1 : i32
    %c0_i32_133 = arith.constant 0 : i32
    %c0_i32_134 = arith.constant 0 : i32
    %c0_i32_135 = arith.constant 0 : i32
    %184 = tpu.memref_slice %arg8[%c1_i32_130, %c0_i32_134, %c0_i32_135] : memref<2x8x128xf32, #tpu.memory_space<vmem>> -> memref<1x8x128xf32, #tpu.memory_space<vmem>>
    %185 = tpu.memref_squeeze %184 : memref<1x8x128xf32, #tpu.memory_space<vmem>> -> memref<8x128xf32, #tpu.memory_space<vmem>>
    %c0_i32_136 = arith.constant 0 : i32
    %c0_i32_137 = arith.constant 0 : i32
    %186 = tpu.memref_slice %arg8[%c0_i32_131, %c0_i32_136, %c0_i32_137] : memref<2x8x128xf32, #tpu.memory_space<vmem>> -> memref<1x8x128xf32, #tpu.memory_space<vmem>>
    %187 = tpu.memref_squeeze %186 : memref<1x8x128xf32, #tpu.memory_space<vmem>> -> memref<8x128xf32, #tpu.memory_space<vmem>>
    %188 = tpu.memref_slice %arg10[%c1_i32_132, %c0_i32_133] : memref<3x2x!tpu.dma_semaphore, #tpu.memory_space<semaphore_mem>> -> memref<1x1x!tpu.dma_semaphore, #tpu.memory_space<semaphore_mem>>
    %189 = tpu.memref_squeeze %188 : memref<1x1x!tpu.dma_semaphore, #tpu.memory_space<semaphore_mem>> -> memref<!tpu.dma_semaphore, #tpu.memory_space<semaphore_mem>>
    tpu.wait_dma2 semaphore(%189 : memref<!tpu.dma_semaphore, #tpu.memory_space<semaphore_mem>>) src(%185 : memref<8x128xf32, #tpu.memory_space<vmem>>) dst(%187 : memref<8x128xf32, #tpu.memory_space<vmem>>)
    %c1_i32_138 = arith.constant 1 : i32
    %c0_i32_139 = arith.constant 0 : i32
    %c2_i32_140 = arith.constant 2 : i32
    %c0_i32_141 = arith.constant 0 : i32
    %c0_i32_142 = arith.constant 0 : i32
    %c0_i32_143 = arith.constant 0 : i32
    %190 = tpu.memref_slice %arg9[%c1_i32_138, %c0_i32_142, %c0_i32_143] : memref<2x8x128xf32, #tpu.memory_space<vmem>> -> memref<1x8x128xf32, #tpu.memory_space<vmem>>
    %191 = tpu.memref_squeeze %190 : memref<1x8x128xf32, #tpu.memory_space<vmem>> -> memref<8x128xf32, #tpu.memory_space<vmem>>
    %c0_i32_144 = arith.constant 0 : i32
    %c0_i32_145 = arith.constant 0 : i32
    %192 = tpu.memref_slice %arg9[%c0_i32_139, %c0_i32_144, %c0_i32_145] : memref<2x8x128xf32, #tpu.memory_space<vmem>> -> memref<1x8x128xf32, #tpu.memory_space<vmem>>
    %193 = tpu.memref_squeeze %192 : memref<1x8x128xf32, #tpu.memory_space<vmem>> -> memref<8x128xf32, #tpu.memory_space<vmem>>
    %194 = tpu.memref_slice %arg10[%c2_i32_140, %c0_i32_141] : memref<3x2x!tpu.dma_semaphore, #tpu.memory_space<semaphore_mem>> -> memref<1x1x!tpu.dma_semaphore, #tpu.memory_space<semaphore_mem>>
    %195 = tpu.memref_squeeze %194 : memref<1x1x!tpu.dma_semaphore, #tpu.memory_space<semaphore_mem>> -> memref<!tpu.dma_semaphore, #tpu.memory_space<semaphore_mem>>
    tpu.wait_dma2 semaphore(%195 : memref<!tpu.dma_semaphore, #tpu.memory_space<semaphore_mem>>) src(%191 : memref<8x128xf32, #tpu.memory_space<vmem>>) dst(%193 : memref<8x128xf32, #tpu.memory_space<vmem>>)
    %c0_i32_146 = arith.constant 0 : i32
    %196 = arith.addi %0, %c0_i32_146 : i32
    %c0 = arith.constant 0 : index
    %c0_147 = arith.constant 0 : index
    %c0_148 = arith.constant 0 : index
    %197 = vector.load %arg7[%c0, %c0_147, %c0_148] : memref<2x8x128xf32, #tpu.memory_space<vmem>>, vector<1x8x128xf32>
    %198 = vector.shape_cast %197 : vector<1x8x128xf32> to vector<8x128xf32>
    %c0_149 = arith.constant 0 : index
    %c0_150 = arith.constant 0 : index
    %c0_151 = arith.constant 0 : index
    %199 = vector.load %arg8[%c0_149, %c0_150, %c0_151] : memref<2x8x128xf32, #tpu.memory_space<vmem>>, vector<1x8x128xf32>
    %200 = vector.shape_cast %199 : vector<1x8x128xf32> to vector<8x128xf32>
    %c0_152 = arith.constant 0 : index
    %c0_153 = arith.constant 0 : index
    %c0_154 = arith.constant 0 : index
    %201 = vector.load %arg9[%c0_152, %c0_153, %c0_154] : memref<2x8x128xf32, #tpu.memory_space<vmem>>, vector<1x8x128xf32>
    %202 = vector.shape_cast %201 : vector<1x8x128xf32> to vector<8x128xf32>
    %203 = arith.mulf %200, %198 : vector<8x128xf32>
    %cst = arith.constant dense<0.000000e+00> : vector<8xf32>
    %204 = vector.multi_reduction <add>, %203, %cst [1] : vector<8x128xf32> to vector<8xf32>
    %205 = vector.shape_cast %204 : vector<8xf32> to vector<8x1xf32>
    %206 = arith.mulf %202, %198 : vector<8x128xf32>
    %cst_155 = arith.constant dense<0.000000e+00> : vector<8xf32>
    %207 = vector.multi_reduction <add>, %206, %cst_155 [1] : vector<8x128xf32> to vector<8xf32>
    %208 = vector.shape_cast %207 : vector<8xf32> to vector<8x1xf32>
    %cst_156 = arith.constant 0.000000e+00 : f32
    %209 = vector.broadcast %cst_156 : f32 to vector<8x1xf32>
    %210 = arith.minimumf %205, %209 : vector<8x1xf32>
    %211 = math.absf %205 : vector<8x1xf32>
    %cst_157 = arith.constant 0.000000e+00 : f32
    %212 = vector.broadcast %cst_157 : f32 to vector<8x1xf32>
    %213 = arith.subf %212, %211 : vector<8x1xf32>
    %214 = math.exp %213 : vector<8x1xf32>
    %215 = math.log1p %214 : vector<8x1xf32>
    %216 = arith.subf %210, %215 : vector<8x1xf32>
    %cst_158 = arith.constant 0.000000e+00 : f32
    %217 = vector.broadcast %cst_158 : f32 to vector<8x1xf32>
    %218 = arith.subf %217, %208 : vector<8x1xf32>
    %cst_159 = arith.constant 0.000000e+00 : f32
    %219 = vector.broadcast %cst_159 : f32 to vector<8x1xf32>
    %220 = arith.minimumf %218, %219 : vector<8x1xf32>
    %221 = math.absf %218 : vector<8x1xf32>
    %cst_160 = arith.constant 0.000000e+00 : f32
    %222 = vector.broadcast %cst_160 : f32 to vector<8x1xf32>
    %223 = arith.subf %222, %221 : vector<8x1xf32>
    %224 = math.exp %223 : vector<8x1xf32>
    %225 = math.log1p %224 : vector<8x1xf32>
    %226 = arith.subf %220, %225 : vector<8x1xf32>
    %227 = arith.addf %216, %226 : vector<8x1xf32>
    %cst_161 = arith.constant 0.000000e+00 : f32
    %228 = vector.broadcast %cst_161 : f32 to vector<8x1xf32>
    %229 = arith.subf %228, %227 : vector<8x1xf32>
    %230 = tpu.iota {dimensions = array<i32: 0>} : vector<8x1xi32>
    %231 = vector.broadcast %196 : i32 to vector<8x1xi32>
    %232 = arith.addi %230, %231 : vector<8x1xi32>
    %c8_i32_162 = arith.constant 8 : i32
    %233 = vector.broadcast %c8_i32_162 : i32 to vector<8x1xi32>
    %234 = arith.cmpi slt, %232, %233 : vector<8x1xi32>
    %cst_163 = arith.constant 0.000000e+00 : f32
    %235 = vector.broadcast %cst_163 : f32 to vector<8x1xf32>
    %236 = arith.select %234, %229, %235 : vector<8x1xi1>, vector<8x1xf32>
    %237 = vector.shape_cast %236 : vector<8x1xf32> to vector<1x8x1xf32>
    %cst_164 = arith.constant dense<0.000000e+00> : vector<1xf32>
    %238 = vector.multi_reduction <add>, %237, %cst_164 [1, 2] : vector<1x8x1xf32> to vector<1xf32>
    %239 = vector.shape_cast %238 : vector<1xf32> to vector<1x1x1xf32>
    %240 = vector.extract %239[0, 0, 0] : f32 from vector<1x1x1xf32>
    %cst_165 = arith.constant 0.000000e+00 : f32
    %241 = arith.addf %cst_165, %240 : f32
    %cst_166 = arith.constant 0.000000e+00 : f32
    %242 = vector.broadcast %cst_166 : f32 to vector<1x8x128xf32>
    %243 = vector.broadcast %241 : f32 to vector<1x8x128xf32>
    %244 = arith.addf %242, %243 : vector<1x8x128xf32>
    %c0_167 = arith.constant 0 : index
    %c0_168 = arith.constant 0 : index
    %c0_169 = arith.constant 0 : index
    %245 = vector.load %arg6[%c0_167, %c0_168, %c0_169] : memref<1x8x128xf32, #tpu.memory_space<vmem>>, vector<1x8x128xf32>
    tpu.vector_store %arg6[%c0_167, %c0_168, %c0_169], %244 {strides = array<i32>} : memref<1x8x128xf32, #tpu.memory_space<vmem>>, vector<1x8x128xf32>,
    return
  }
  func.func @transform_2(%arg0: i32, %arg1: memref<8xi32, #tpu.memory_space<smem>>, %arg2: memref<8xi32, #tpu.memory_space<smem>>, %arg3: memref<8xi32, #tpu.memory_space<smem>>) -> (i32, i32, i32) {
    %c0_i32 = arith.constant 0 : i32
    %c0_i32_0 = arith.constant 0 : i32
    %c0_i32_1 = arith.constant 0 : i32
    return %arg0, %c0_i32, %c0_i32_0 : i32, i32, i32
  }
}

</mosaic_0001>

<llo_original>
// kernel: tpu_custom_call.1
$region0: #{tpu_custom_call.1}
  #allocation0 [shape = 'u32[]', space=smem, size = 0x4, offset = 0x4, fixed_abs, tag = 'smem constant byte address 0x4 - core index']
  #allocation1 [shape = 'u32[144,128]{1,0:T(1,128)}', space=vmem, size = 0x12000, scoped, tag = 'internal scratch']
  #allocation2 [shape = 'f32[2,8,128]{2,1,0:T(8,128)}', space=vmem, size = 0x2000, scoped, tag = 'scratch operand']
  #allocation3 [shape = 'f32[2,8,128]{2,1,0:T(8,128)}', space=vmem, size = 0x2000, scoped, tag = 'scratch operand']
  #allocation4 [shape = 'f32[2,8,128]{2,1,0:T(8,128)}', space=vmem, size = 0x2000, scoped, tag = 'scratch operand']
  #allocation5 [shape = 's32[6]{0}', space=sflag, size = 0x18, scoped, tag = 'scratch operand']
  #allocation6 [shape = 's32[1]{0}', space=sflag, size = 0x4, scoped, tag = 'scoped memory for tpu_custom_call.1']
  #allocation7 [shape = 'u8[512]{0}', space=smem, size = 0x200, scoped, tag = 'prefetched SMEM operand 0']
  #allocation8 [shape = 'u8[512]{0}', space=smem, size = 0x200, scoped, tag = 'prefetched SMEM operand 1']
  #allocation9 [shape = 'u8[512]{0}', space=smem, size = 0x200, scoped, tag = 'prefetched SMEM operand 2']
  #allocation12 [shape = 's32[]', space=sflag, size = 0x4, offset = 0, fixed_abs, tag = 'sflag constant byte address 0x0 - dummy sync flag']
  #allocation13 [shape = 's32[]', space=sflag, size = 0x4, offset = 0, fixed_abs, tag = 'sflag constant byte address 0x0 - dummy sync flag']
  #allocation14 [shape = 'u32[]', space=smem, size = 0x4, offset = 0x44, fixed_abs, tag = 'smem constant byte address 0x44 - assertion arg 0']
  #allocation15 [shape = 'u32[]', space=smem, size = 0x4, offset = 0x48, fixed_abs, tag = 'smem constant byte address 0x48 - assertion arg 1']
  #allocation16 [shape = 's32[]', space=sflag, size = 0x4, offset = 0, fixed_abs, tag = 'sflag constant byte address 0x0 - dummy sync flag']
  #allocation17 [shape = 's32[]', space=sflag, size = 0x4, offset = 0, fixed_abs, tag = 'sflag constant byte address 0x0 - dummy sync flag']
  #allocation18 [shape = 's32[]', space=sflag, size = 0x4, offset = 0, fixed_abs, tag = 'sflag constant byte address 0x0 - dummy sync flag']
  #allocation19 [shape = 's32[]', space=sflag, size = 0x4, offset = 0, fixed_abs, tag = 'sflag constant byte address 0x0 - dummy sync flag']
  #allocation20 [shape = 's32[]', space=sflag, size = 0x4, offset = 0, fixed_abs, tag = 'sflag constant byte address 0x0 - dummy sync flag']
  #allocation21 [shape = 's32[]', space=sflag, size = 0x4, offset = 0, fixed_abs, tag = 'sflag constant byte address 0x0 - dummy sync flag']
  #allocation22 [shape = 's32[]', space=sflag, size = 0x4, offset = 0, fixed_abs, tag = 'sflag constant byte address 0x0 - dummy sync flag']
  #allocation23 [shape = 's32[]', space=sflag, size = 0x4, offset = 0, fixed_abs, tag = 'sflag constant byte address 0x0 - dummy sync flag']
  #allocation24 [shape = 's32[]', space=sflag, size = 0x4, offset = 0, fixed_abs, tag = 'sflag constant byte address 0x0 - dummy sync flag']
  #allocation25 [shape = 's32[]', space=sflag, size = 0x4, offset = 0, fixed_abs, tag = 'sflag constant byte address 0x0 - dummy sync flag']
  #allocation26 [shape = 's32[]', space=sflag, size = 0x4, offset = 0, fixed_abs, tag = 'sflag constant byte address 0x0 - dummy sync flag']
  #allocation27 [shape = 's32[]', space=sflag, size = 0x4, offset = 0, fixed_abs, tag = 'sflag constant byte address 0x0 - dummy sync flag']
  #allocation28 [shape = 's32[]', space=sflag, size = 0x4, offset = 0, fixed_abs, tag = 'sflag constant byte address 0x0 - dummy sync flag']
  #allocation29 [shape = 's32[]', space=sflag, size = 0x4, offset = 0, fixed_abs, tag = 'sflag constant byte address 0x0 - dummy sync flag']
  #allocation30 [shape = 's32[]', space=sflag, size = 0x4, offset = 0, fixed_abs, tag = 'sflag constant byte address 0x0 - dummy sync flag']
  #allocation31 [shape = 's32[]', space=sflag, size = 0x4, offset = 0, fixed_abs, tag = 'sflag constant byte address 0x0 - dummy sync flag']
  #allocation32 [shape = 's32[]', space=sflag, size = 0x4, offset = 0, fixed_abs, tag = 'sflag constant byte address 0x0 - dummy sync flag']
  #allocation33 [shape = 's32[]', space=sflag, size = 0x4, offset = 0, fixed_abs, tag = 'sflag constant byte address 0x0 - dummy sync flag']
  #allocation34 [shape = 's32[]', space=sflag, size = 0x4, offset = 0, fixed_abs, tag = 'sflag constant byte address 0x0 - dummy sync flag']
  #allocation35 [shape = 's32[]', space=sflag, size = 0x4, offset = 0, fixed_abs, tag = 'sflag constant byte address 0x0 - dummy sync flag']
  #allocation36 [shape = 's32[]', space=sflag, size = 0x4, offset = 0, fixed_abs, tag = 'sflag constant byte address 0x0 - dummy sync flag']
  #allocation37 [shape = 's32[]', space=sflag, size = 0x4, offset = 0, fixed_abs, tag = 'sflag constant byte address 0x0 - dummy sync flag']
  #allocation38 [shape = 's32[]', space=sflag, size = 0x4, offset = 0, fixed_abs, tag = 'sflag constant byte address 0x0 - dummy sync flag']
  #allocation39 [shape = 's32[]', space=sflag, size = 0x4, offset = 0, fixed_abs, tag = 'sflag constant byte address 0x0 - dummy sync flag']
  #allocation40 [shape = 's32[]', space=sflag, size = 0x4, offset = 0, fixed_abs, tag = 'sflag constant byte address 0x0 - dummy sync flag']
  #allocation41 [shape = 's32[]', space=sflag, size = 0x4, offset = 0, fixed_abs, tag = 'sflag constant byte address 0x0 - dummy sync flag']
  #allocation42 [shape = 's32[]', space=sflag, size = 0x4, offset = 0, fixed_abs, tag = 'sflag constant byte address 0x0 - dummy sync flag']
  #allocation43 [shape = 's32[]', space=sflag, size = 0x4, offset = 0, fixed_abs, tag = 'sflag constant byte address 0x0 - dummy sync flag']
  #allocation44 [shape = 's32[]', space=sflag, size = 0x4, offset = 0, fixed_abs, tag = 'sflag constant byte address 0x0 - dummy sync flag']
  #allocation45 [shape = 's32[]', space=sflag, size = 0x4, offset = 0, fixed_abs, tag = 'sflag constant byte address 0x0 - dummy sync flag']
  #allocation46 [shape = 's32[]', space=sflag, size = 0x4, offset = 0, fixed_abs, tag = 'sflag constant byte address 0x0 - dummy sync flag']
  #allocation47 [shape = 's32[]', space=sflag, size = 0x4, offset = 0, fixed_abs, tag = 'sflag constant byte address 0x0 - dummy sync flag']
  #allocation48 [shape = 's32[]', space=sflag, size = 0x4, offset = 0, fixed_abs, tag = 'sflag constant byte address 0x0 - dummy sync flag']
  #allocation49 [shape = 's32[]', space=sflag, size = 0x4, offset = 0, fixed_abs, tag = 'sflag constant byte address 0x0 - dummy sync flag']
  #allocation50 [shape = 's32[]', space=sflag, size = 0x4, offset = 0, fixed_abs, tag = 'sflag constant byte address 0x0 - dummy sync flag']
  #allocation51 [shape = 's32[]', space=sflag, size = 0x4, offset = 0, fixed_abs, tag = 'sflag constant byte address 0x0 - dummy sync flag']
  #allocation52 [shape = 's32[]', space=sflag, size = 0x4, offset = 0, fixed_abs, tag = 'sflag constant byte address 0x0 - dummy sync flag']
  #allocation53 [shape = 's32[]', space=sflag, size = 0x4, offset = 0, fixed_abs, tag = 'sflag constant byte address 0x0 - dummy sync flag']
  #allocation54 [shape = 's32[]', space=sflag, size = 0x4, offset = 0, fixed_abs, tag = 'sflag constant byte address 0x0 - dummy sync flag']
  #allocation55 [shape = 's32[]', space=sflag, size = 0x4, offset = 0, fixed_abs, tag = 'sflag constant byte address 0x0 - dummy sync flag']
  #allocation56 [shape = 's32[]', space=sflag, size = 0x4, offset = 0, fixed_abs, tag = 'sflag constant byte address 0x0 - dummy sync flag']
  #allocation57 [shape = 's32[]', space=sflag, size = 0x4, offset = 0, fixed_abs, tag = 'sflag constant byte address 0x0 - dummy sync flag']
  #allocation58 [shape = 's32[]', space=sflag, size = 0x4, offset = 0, fixed_abs, tag = 'sflag constant byte address 0x0 - dummy sync flag']
  #allocation59 [shape = 's32[]', space=sflag, size = 0x4, offset = 0, fixed_abs, tag = 'sflag constant byte address 0x0 - dummy sync flag']
  #allocation60 [shape = 's32[]', space=sflag, size = 0x4, offset = 0, fixed_abs, tag = 'sflag constant byte address 0x0 - dummy sync flag']
  #allocation61 [shape = 's32[]', space=sflag, size = 0x4, offset = 0, fixed_abs, tag = 'sflag constant byte address 0x0 - dummy sync flag']
  %s0 = inlined_call_operand.hbm [shape: s32[8], index: 0, kind: input, shape index: {}]
  %s1 = inlined_call_operand.vmem [shape: s32[8], index: 1, kind: input, shape index: {}]
  %s2 = inlined_call_operand.vmem [shape: s32[8], index: 2, kind: input, shape index: {}]
  %s3 = inlined_call_operand.hbm [shape: f32[64,128], index: 3, kind: input, shape index: {}]
  %s4 = inlined_call_operand.hbm [shape: f32[64,128], index: 4, kind: input, shape index: {}]
  %s5 = inlined_call_operand.hbm [shape: f32[1,8,128], index: 5, kind: output, shape index: {}]
  %s6 = sld [smem:[#allocation0]]
  $region106: #{tpu_custom_call.1} parent=0
    _
  %s8 = ssub.s32 1, %s6
  %s9 = scalar_select 0, %s8, %s6
  %11 = dma.hbm_to_smem %s0, 16, [#allocation7], [#allocation6]
  %s12 = sshll.u32 %s1, 4
  %s13 = int_to_ptr.vmem [resolvable:$true] %s12
  %15 = dma.vmem_to_smem %s13, 16, [#allocation8], [#allocation6]
  %s16 = sshll.u32 %s2, 4
  %s17 = int_to_ptr.vmem [resolvable:$true] %s16
  %19 = dma.vmem_to_smem %s17, 16, [#allocation9], [#allocation6]
  %20 = dma.done [#allocation6], 48
  %21 = sfence
  $region1: #{tpu_custom_call.1} parent=0
    #allocation10 [shape = 'u8[4096]{0}', space=vmem, size = 0x1000, scoped, tag = 'output window, operand 0, single buffered']
    #allocation11 [shape = 's32[1]{0}', space=sflag, size = 0x4, scoped, tag = 'scoped memory for tpu_custom_call.1']
    %22 = vsyncpa [#allocation11], 0
    %s23 = smul.u32 0, 8
    %s24 = sld [smem:[#allocation7 + %s23]]
    %s25 = smul.addr %s24, 16
    %s26 = scalar_lea.hbm %s3, %s25
    // Predicated region
    $region2: #{tpu_custom_call.1} parent=1 // pred_check
      _
    $region3: #{tpu_custom_call.1} parent=1 // pred_check_branch
      %28 = sbr.rel target = $region5
    $region4: #{tpu_custom_call.1} parent=1 // pred_region
      %29 = sst [smem:[#allocation14]] [#allocation13]
      %30 = sst [smem:[#allocation15]] [#allocation12]
    $region5: #{tpu_custom_call.1} parent=1 // pred_fallthru
      _
    %32 = shalt.err (0)
    %s34 = sshll.u32 [#allocation2], 4
    %s35 = int_to_ptr.vmem [resolvable:$true] %s34
    %37 = dma.hbm_to_vmem [thread:$0]  %s26, 16, %s35, [#allocation5]
    %s38 = sld [smem:[#allocation8 + %s23]]
    %s39 = smul.addr %s38, 16
    %s40 = scalar_lea.hbm %s4, %s39
    %s41 = scalar_lea.sflag [#allocation5], 2
    // Predicated region
    $region6: #{tpu_custom_call.1} parent=1 // pred_check
      _
    $region7: #{tpu_custom_call.1} parent=1 // pred_check_branch
      %43 = sbr.rel target = $region9
    $region8: #{tpu_custom_call.1} parent=1 // pred_region
      %44 = sst [smem:[#allocation14]] [#allocation17]
      %45 = sst [smem:[#allocation15]] [#allocation16]
    $region9: #{tpu_custom_call.1} parent=1 // pred_fallthru
      _
    %47 = shalt.err (0)
    %s49 = sshll.u32 [#allocation3], 4
    %s50 = int_to_ptr.vmem [resolvable:$true] %s49
    %52 = dma.hbm_to_vmem [thread:$0]  %s40, 16, %s50, %s41
    %s53 = sld [smem:[#allocation9 + %s23]]
    %s54 = smul.addr %s53, 16
    %s55 = scalar_lea.hbm %s4, %s54
    %s56 = scalar_lea.sflag [#allocation5], 4
    // Predicated region
    $region10: #{tpu_custom_call.1} parent=1 // pred_check
      _
    $region11: #{tpu_custom_call.1} parent=1 // pred_check_branch
      %58 = sbr.rel target = $region13
    $region12: #{tpu_custom_call.1} parent=1 // pred_region
      %59 = sst [smem:[#allocation14]] [#allocation19]
      %60 = sst [smem:[#allocation15]] [#allocation18]
    $region13: #{tpu_custom_call.1} parent=1 // pred_fallthru
      _
    %62 = shalt.err (0)
    %s64 = sshll.u32 [#allocation4], 4
    %s65 = int_to_ptr.vmem [resolvable:$true] %s64
    %67 = dma.hbm_to_vmem [thread:$0]  %s55, 16, %s65, %s56
    %s68 = sadd.s32 %s23, 1
    %s69 = sld [smem:[#allocation7 + %s68]]
    %s70 = smul.addr %s69, 16
    %s71 = scalar_lea.hbm %s3, %s70
    %s72 = scalar_lea.vmem [#allocation2], 1
    // Predicated region
    $region14: #{tpu_custom_call.1} parent=1 // pred_check
      _
    $region15: #{tpu_custom_call.1} parent=1 // pred_check_branch
      %74 = sbr.rel target = $region17
    $region16: #{tpu_custom_call.1} parent=1 // pred_region
      %75 = sst [smem:[#allocation14]] [#allocation21]
      %76 = sst [smem:[#allocation15]] [#allocation20]
    $region17: #{tpu_custom_call.1} parent=1 // pred_fallthru
      _
    %78 = shalt.err (0)
    %s80 = sshll.u32 %s72, 4
    %s81 = int_to_ptr.vmem [resolvable:$true] %s80
    %83 = dma.hbm_to_vmem [thread:$0]  %s71, 16, %s81, [#allocation5]
    %s84 = sld [smem:[#allocation8 + %s68]]
    %s85 = smul.addr %s84, 16
    %s86 = scalar_lea.hbm %s4, %s85
    %s87 = scalar_lea.vmem [#allocation3], 1
    // Predicated region
    $region18: #{tpu_custom_call.1} parent=1 // pred_check
      _
    $region19: #{tpu_custom_call.1} parent=1 // pred_check_branch
      %89 = sbr.rel target = $region21
    $region20: #{tpu_custom_call.1} parent=1 // pred_region
      %90 = sst [smem:[#allocation14]] [#allocation23]
      %91 = sst [smem:[#allocation15]] [#allocation22]
    $region21: #{tpu_custom_call.1} parent=1 // pred_fallthru
      _
    %93 = shalt.err (0)
    %s95 = sshll.u32 %s87, 4
    %s96 = int_to_ptr.vmem [resolvable:$true] %s95
    %98 = dma.hbm_to_vmem [thread:$0]  %s86, 16, %s96, %s41
    %s99 = sld [smem:[#allocation9 + %s68]]
    %s100 = smul.addr %s99, 16
    %s101 = scalar_lea.hbm %s4, %s100
    %s102 = scalar_lea.vmem [#allocation4], 1
    // Predicated region
    $region22: #{tpu_custom_call.1} parent=1 // pred_check
      _
    $region23: #{tpu_custom_call.1} parent=1 // pred_check_branch
      %104 = sbr.rel target = $region25
    $region24: #{tpu_custom_call.1} parent=1 // pred_region
      %105 = sst [smem:[#allocation14]] [#allocation25]
      %106 = sst [smem:[#allocation15]] [#allocation24]
    $region25: #{tpu_custom_call.1} parent=1 // pred_fallthru
      _
    %108 = shalt.err (0)
    %s110 = sshll.u32 %s102, 4
    %s111 = int_to_ptr.vmem [resolvable:$true] %s110
    %113 = dma.hbm_to_vmem [thread:$0]  %s101, 16, %s111, %s56
    %s114 = sadd.s32 %s23, 2
    %s115 = sld [smem:[#allocation7 + %s114]]
    %s116 = smul.addr %s115, 16
    %s117 = scalar_lea.hbm %s3, %s116
    %s118 = scalar_lea.vmem [#allocation2], 2
    // Predicated region
    $region26: #{tpu_custom_call.1} parent=1 // pred_check
      _
    $region27: #{tpu_custom_call.1} parent=1 // pred_check_branch
      %120 = sbr.rel target = $region29
    $region28: #{tpu_custom_call.1} parent=1 // pred_region
      %121 = sst [smem:[#allocation14]] [#allocation27]
      %122 = sst [smem:[#allocation15]] [#allocation26]
    $region29: #{tpu_custom_call.1} parent=1 // pred_fallthru
      _
    %124 = shalt.err (0)
    %s126 = sshll.u32 %s118, 4
    %s127 = int_to_ptr.vmem [resolvable:$true] %s126
    %129 = dma.hbm_to_vmem [thread:$0]  %s117, 16, %s127, [#allocation5]
    %s130 = sld [smem:[#allocation8 + %s114]]
    %s131 = smul.addr %s130, 16
    %s132 = scalar_lea.hbm %s4, %s131
    %s133 = scalar_lea.vmem [#allocation3], 2
    // Predicated region
    $region30: #{tpu_custom_call.1} parent=1 // pred_check
      _
    $region31: #{tpu_custom_call.1} parent=1 // pred_check_branch
      %135 = sbr.rel target = $region33
    $region32: #{tpu_custom_call.1} parent=1 // pred_region
      %136 = sst [smem:[#allocation14]] [#allocation29]
      %137 = sst [smem:[#allocation15]] [#allocation28]
    $region33: #{tpu_custom_call.1} parent=1 // pred_fallthru
      _
    %139 = shalt.err (0)
    %s141 = sshll.u32 %s133, 4
    %s142 = int_to_ptr.vmem [resolvable:$true] %s141
    %144 = dma.hbm_to_vmem [thread:$0]  %s132, 16, %s142, %s41
    %s145 = sld [smem:[#allocation9 + %s114]]
    %s146 = smul.addr %s145, 16
    %s147 = scalar_lea.hbm %s4, %s146
    %s148 = scalar_lea.vmem [#allocation4], 2
    // Predicated region
    $region34: #{tpu_custom_call.1} parent=1 // pred_check
      _
    $region35: #{tpu_custom_call.1} parent=1 // pred_check_branch
      %150 = sbr.rel target = $region37
    $region36: #{tpu_custom_call.1} parent=1 // pred_region
      %151 = sst [smem:[#allocation14]] [#allocation31]
      %152 = sst [smem:[#allocation15]] [#allocation30]
    $region37: #{tpu_custom_call.1} parent=1 // pred_fallthru
      _
    %154 = shalt.err (0)
    %s156 = sshll.u32 %s148, 4
    %s157 = int_to_ptr.vmem [resolvable:$true] %s156
    %159 = dma.hbm_to_vmem [thread:$0]  %s147, 16, %s157, %s56
    %s160 = sadd.s32 %s23, 3
    %s161 = sld [smem:[#allocation7 + %s160]]
    %s162 = smul.addr %s161, 16
    %s163 = scalar_lea.hbm %s3, %s162
    %s164 = scalar_lea.vmem [#allocation2], 3
    // Predicated region
    $region38: #{tpu_custom_call.1} parent=1 // pred_check
      _
    $region39: #{tpu_custom_call.1} parent=1 // pred_check_branch
      %166 = sbr.rel target = $region41
    $region40: #{tpu_custom_call.1} parent=1 // pred_region
      %167 = sst [smem:[#allocation14]] [#allocation33]
      %168 = sst [smem:[#allocation15]] [#allocation32]
    $region41: #{tpu_custom_call.1} parent=1 // pred_fallthru
      _
    %170 = shalt.err (0)
    %s172 = sshll.u32 %s164, 4
    %s173 = int_to_ptr.vmem [resolvable:$true] %s172
    %175 = dma.hbm_to_vmem [thread:$0]  %s163, 16, %s173, [#allocation5]
    %s176 = sld [smem:[#allocation8 + %s160]]
    %s177 = smul.addr %s176, 16
    %s178 = scalar_lea.hbm %s4, %s177
    %s179 = scalar_lea.vmem [#allocation3], 3
    // Predicated region
    $region42: #{tpu_custom_call.1} parent=1 // pred_check
      _
    $region43: #{tpu_custom_call.1} parent=1 // pred_check_branch
      %181 = sbr.rel target = $region45
    $region44: #{tpu_custom_call.1} parent=1 // pred_region
      %182 = sst [smem:[#allocation14]] [#allocation35]
      %183 = sst [smem:[#allocation15]] [#allocation34]
    $region45: #{tpu_custom_call.1} parent=1 // pred_fallthru
      _
    %185 = shalt.err (0)
    %s187 = sshll.u32 %s179, 4
    %s188 = int_to_ptr.vmem [resolvable:$true] %s187
    %190 = dma.hbm_to_vmem [thread:$0]  %s178, 16, %s188, %s41
    %s191 = sld [smem:[#allocation9 + %s160]]
    %s192 = smul.addr %s191, 16
    %s193 = scalar_lea.hbm %s4, %s192
    %s194 = scalar_lea.vmem [#allocation4], 3
    // Predicated region
    $region46: #{tpu_custom_call.1} parent=1 // pred_check
      _
    $region47: #{tpu_custom_call.1} parent=1 // pred_check_branch
      %196 = sbr.rel target = $region49
    $region48: #{tpu_custom_call.1} parent=1 // pred_region
      %197 = sst [smem:[#allocation14]] [#allocation37]
      %198 = sst [smem:[#allocation15]] [#allocation36]
    $region49: #{tpu_custom_call.1} parent=1 // pred_fallthru
      _
    %200 = shalt.err (0)
    %s202 = sshll.u32 %s194, 4
    %s203 = int_to_ptr.vmem [resolvable:$true] %s202
    %205 = dma.hbm_to_vmem [thread:$0]  %s193, 16, %s203, %s56
    %s206 = sadd.s32 %s23, 4
    %s207 = sld [smem:[#allocation7 + %s206]]
    %s208 = smul.addr %s207, 16
    %s209 = scalar_lea.hbm %s3, %s208
    %s210 = scalar_lea.vmem [#allocation2], 4
    // Predicated region
    $region50: #{tpu_custom_call.1} parent=1 // pred_check
      _
    $region51: #{tpu_custom_call.1} parent=1 // pred_check_branch
      %212 = sbr.rel target = $region53
    $region52: #{tpu_custom_call.1} parent=1 // pred_region
      %213 = sst [smem:[#allocation14]] [#allocation39]
      %214 = sst [smem:[#allocation15]] [#allocation38]
    $region53: #{tpu_custom_call.1} parent=1 // pred_fallthru
      _
    %216 = shalt.err (0)
    %s218 = sshll.u32 %s210, 4
    %s219 = int_to_ptr.vmem [resolvable:$true] %s218
    %221 = dma.hbm_to_vmem [thread:$0]  %s209, 16, %s219, [#allocation5]
    %s222 = sld [smem:[#allocation8 + %s206]]
    %s223 = smul.addr %s222, 16
    %s224 = scalar_lea.hbm %s4, %s223
    %s225 = scalar_lea.vmem [#allocation3], 4
    // Predicated region
    $region54: #{tpu_custom_call.1} parent=1 // pred_check
      _
    $region55: #{tpu_custom_call.1} parent=1 // pred_check_branch
      %227 = sbr.rel target = $region57
    $region56: #{tpu_custom_call.1} parent=1 // pred_region
      %228 = sst [smem:[#allocation14]] [#allocation41]
      %229 = sst [smem:[#allocation15]] [#allocation40]
    $region57: #{tpu_custom_call.1} parent=1 // pred_fallthru
      _
    %231 = shalt.err (0)
    %s233 = sshll.u32 %s225, 4
    %s234 = int_to_ptr.vmem [resolvable:$true] %s233
    %236 = dma.hbm_to_vmem [thread:$0]  %s224, 16, %s234, %s41
    %s237 = sld [smem:[#allocation9 + %s206]]
    %s238 = smul.addr %s237, 16
    %s239 = scalar_lea.hbm %s4, %s238
    %s240 = scalar_lea.vmem [#allocation4], 4
    // Predicated region
    $region58: #{tpu_custom_call.1} parent=1 // pred_check
      _
    $region59: #{tpu_custom_call.1} parent=1 // pred_check_branch
      %242 = sbr.rel target = $region61
    $region60: #{tpu_custom_call.1} parent=1 // pred_region
      %243 = sst [smem:[#allocation14]] [#allocation43]
      %244 = sst [smem:[#allocation15]] [#allocation42]
    $region61: #{tpu_custom_call.1} parent=1 // pred_fallthru
      _
    %246 = shalt.err (0)
    %s248 = sshll.u32 %s240, 4
    %s249 = int_to_ptr.vmem [resolvable:$true] %s248
    %251 = dma.hbm_to_vmem [thread:$0]  %s239, 16, %s249, %s56
    %s252 = sadd.s32 %s23, 5
    %s253 = sld [smem:[#allocation7 + %s252]]
    %s254 = smul.addr %s253, 16
    %s255 = scalar_lea.hbm %s3, %s254
    %s256 = scalar_lea.vmem [#allocation2], 5
    // Predicated region
    $region62: #{tpu_custom_call.1} parent=1 // pred_check
      _
    $region63: #{tpu_custom_call.1} parent=1 // pred_check_branch
      %258 = sbr.rel target = $region65
    $region64: #{tpu_custom_call.1} parent=1 // pred_region
      %259 = sst [smem:[#allocation14]] [#allocation45]
      %260 = sst [smem:[#allocation15]] [#allocation44]
    $region65: #{tpu_custom_call.1} parent=1 // pred_fallthru
      _
    %262 = shalt.err (0)
    %s264 = sshll.u32 %s256, 4
    %s265 = int_to_ptr.vmem [resolvable:$true] %s264
    %267 = dma.hbm_to_vmem [thread:$0]  %s255, 16, %s265, [#allocation5]
    %s268 = sld [smem:[#allocation8 + %s252]]
    %s269 = smul.addr %s268, 16
    %s270 = scalar_lea.hbm %s4, %s269
    %s271 = scalar_lea.vmem [#allocation3], 5
    // Predicated region
    $region66: #{tpu_custom_call.1} parent=1 // pred_check
      _
    $region67: #{tpu_custom_call.1} parent=1 // pred_check_branch
      %273 = sbr.rel target = $region69
    $region68: #{tpu_custom_call.1} parent=1 // pred_region
      %274 = sst [smem:[#allocation14]] [#allocation47]
      %275 = sst [smem:[#allocation15]] [#allocation46]
    $region69: #{tpu_custom_call.1} parent=1 // pred_fallthru
      _
    %277 = shalt.err (0)
    %s279 = sshll.u32 %s271, 4
    %s280 = int_to_ptr.vmem [resolvable:$true] %s279
    %282 = dma.hbm_to_vmem [thread:$0]  %s270, 16, %s280, %s41
    %s283 = sld [smem:[#allocation9 + %s252]]
    %s284 = smul.addr %s283, 16
    %s285 = scalar_lea.hbm %s4, %s284
    %s286 = scalar_lea.vmem [#allocation4], 5
    // Predicated region
    $region70: #{tpu_custom_call.1} parent=1 // pred_check
      _
    $region71: #{tpu_custom_call.1} parent=1 // pred_check_branch
      %288 = sbr.rel target = $region73
    $region72: #{tpu_custom_call.1} parent=1 // pred_region
      %289 = sst [smem:[#allocation14]] [#allocation49]
      %290 = sst [smem:[#allocation15]] [#allocation48]
    $region73: #{tpu_custom_call.1} parent=1 // pred_fallthru
      _
    %292 = shalt.err (0)
    %s294 = sshll.u32 %s286, 4
    %s295 = int_to_ptr.vmem [resolvable:$true] %s294
    %297 = dma.hbm_to_vmem [thread:$0]  %s285, 16, %s295, %s56
    %s298 = sadd.s32 %s23, 6
    %s299 = sld [smem:[#allocation7 + %s298]]
    %s300 = smul.addr %s299, 16
    %s301 = scalar_lea.hbm %s3, %s300
    %s302 = scalar_lea.vmem [#allocation2], 6
    // Predicated region
    $region74: #{tpu_custom_call.1} parent=1 // pred_check
      _
    $region75: #{tpu_custom_call.1} parent=1 // pred_check_branch
      %304 = sbr.rel target = $region77
    $region76: #{tpu_custom_call.1} parent=1 // pred_region
      %305 = sst [smem:[#allocation14]] [#allocation51]
      %306 = sst [smem:[#allocation15]] [#allocation50]
    $region77: #{tpu_custom_call.1} parent=1 // pred_fallthru
      _
    %308 = shalt.err (0)
    %s310 = sshll.u32 %s302, 4
    %s311 = int_to_ptr.vmem [resolvable:$true] %s310
    %313 = dma.hbm_to_vmem [thread:$0]  %s301, 16, %s311, [#allocation5]
    %s314 = sld [smem:[#allocation8 + %s298]]
    %s315 = smul.addr %s314, 16
    %s316 = scalar_lea.hbm %s4, %s315
    %s317 = scalar_lea.vmem [#allocation3], 6
    // Predicated region
    $region78: #{tpu_custom_call.1} parent=1 // pred_check
      _
    $region79: #{tpu_custom_call.1} parent=1 // pred_check_branch
      %319 = sbr.rel target = $region81
    $region80: #{tpu_custom_call.1} parent=1 // pred_region
      %320 = sst [smem:[#allocation14]] [#allocation53]
      %321 = sst [smem:[#allocation15]] [#allocation52]
    $region81: #{tpu_custom_call.1} parent=1 // pred_fallthru
      _
    %323 = shalt.err (0)
    %s325 = sshll.u32 %s317, 4
    %s326 = int_to_ptr.vmem [resolvable:$true] %s325
    %328 = dma.hbm_to_vmem [thread:$0]  %s316, 16, %s326, %s41
    %s329 = sld [smem:[#allocation9 + %s298]]
    %s330 = smul.addr %s329, 16
    %s331 = scalar_lea.hbm %s4, %s330
    %s332 = scalar_lea.vmem [#allocation4], 6
    // Predicated region
    $region82: #{tpu_custom_call.1} parent=1 // pred_check
      _
    $region83: #{tpu_custom_call.1} parent=1 // pred_check_branch
      %334 = sbr.rel target = $region85
    $region84: #{tpu_custom_call.1} parent=1 // pred_region
      %335 = sst [smem:[#allocation14]] [#allocation55]
      %336 = sst [smem:[#allocation15]] [#allocation54]
    $region85: #{tpu_custom_call.1} parent=1 // pred_fallthru
      _
    %338 = shalt.err (0)
    %s340 = sshll.u32 %s332, 4
    %s341 = int_to_ptr.vmem [resolvable:$true] %s340
    %343 = dma.hbm_to_vmem [thread:$0]  %s331, 16, %s341, %s56
    %s344 = sadd.s32 %s23, 7
    %s345 = sld [smem:[#allocation7 + %s344]]
    %s346 = smul.addr %s345, 16
    %s347 = scalar_lea.hbm %s3, %s346
    %s348 = scalar_lea.vmem [#allocation2], 7
    // Predicated region
    $region86: #{tpu_custom_call.1} parent=1 // pred_check
      _
    $region87: #{tpu_custom_call.1} parent=1 // pred_check_branch
      %350 = sbr.rel target = $region89
    $region88: #{tpu_custom_call.1} parent=1 // pred_region
      %351 = sst [smem:[#allocation14]] [#allocation57]
      %352 = sst [smem:[#allocation15]] [#allocation56]
    $region89: #{tpu_custom_call.1} parent=1 // pred_fallthru
      _
    %354 = shalt.err (0)
    %s356 = sshll.u32 %s348, 4
    %s357 = int_to_ptr.vmem [resolvable:$true] %s356
    %359 = dma.hbm_to_vmem [thread:$0]  %s347, 16, %s357, [#allocation5]
    %s360 = sld [smem:[#allocation8 + %s344]]
    %s361 = smul.addr %s360, 16
    %s362 = scalar_lea.hbm %s4, %s361
    %s363 = scalar_lea.vmem [#allocation3], 7
    // Predicated region
    $region90: #{tpu_custom_call.1} parent=1 // pred_check
      _
    $region91: #{tpu_custom_call.1} parent=1 // pred_check_branch
      %365 = sbr.rel target = $region93
    $region92: #{tpu_custom_call.1} parent=1 // pred_region
      %366 = sst [smem:[#allocation14]] [#allocation59]
      %367 = sst [smem:[#allocation15]] [#allocation58]
    $region93: #{tpu_custom_call.1} parent=1 // pred_fallthru
      _
    %369 = shalt.err (0)
    %s371 = sshll.u32 %s363, 4
    %s372 = int_to_ptr.vmem [resolvable:$true] %s371
    %374 = dma.hbm_to_vmem [thread:$0]  %s362, 16, %s372, %s41
    %s375 = sld [smem:[#allocation9 + %s344]]
    %s376 = smul.addr %s375, 16
    %s377 = scalar_lea.hbm %s4, %s376
    %s378 = scalar_lea.vmem [#allocation4], 7
    // Predicated region
    $region94: #{tpu_custom_call.1} parent=1 // pred_check
      _
    $region95: #{tpu_custom_call.1} parent=1 // pred_check_branch
      %380 = sbr.rel target = $region97
    $region96: #{tpu_custom_call.1} parent=1 // pred_region
      %381 = sst [smem:[#allocation14]] [#allocation61]
      %382 = sst [smem:[#allocation15]] [#allocation60]
    $region97: #{tpu_custom_call.1} parent=1 // pred_fallthru
      _
    %384 = shalt.err (0)
    %s386 = sshll.u32 %s378, 4
    %s387 = int_to_ptr.vmem [resolvable:$true] %s386
    %389 = dma.hbm_to_vmem [thread:$0]  %s377, 16, %s387, %s56
    %s390 = smul.u32 8, 1
    %s391 = sshll.u32 %s390, 4
    %392 = dma.done [#allocation5], %s391
    %s393 = sshll.u32 %s390, 4
    %394 = dma.done %s41, %s393
    %s395 = sshll.u32 %s390, 4
    %396 = dma.done %s56, %s395
    %v397 = vld [vmem:[#allocation2] sm:$0xff]
    %v398 = vld [vmem:[#allocation3] sm:$0xff]
    %v399 = vld [vmem:[#allocation4] sm:$0xff]
    %v400 = vmul.f32 %v398, %v397
    %401 = vadd.xlane.f32.xlu0 %v400
    %v402 = vpop.xlane.xlu0 %401
    %v403 = vmul.f32 %v399, %v397
    %404 = vadd.xlane.f32.xlu0 %v403
    %v405 = vpop.xlane.xlu0 %404
    %v406 = vmin.f32 %v402, 0.0
    %v407 = vand.u32 2147483647, %v402
    %v408 = vsub.f32 0.0, %v407
    %v409 = vmul.f32 %v408, 1.442695
    %v410 = vpow.pop %v409
    %v411 = vadd.f32 %v410, 1.0
    %v412 = vlog2.pop %v411
    %v413 = vmul.f32 %v412, 0.6931472
    %v414 = vmul.f32 -0.5, %v410
    %v415 = vadd.f32 %v414, 1.0
    %v416 = vmul.f32 %v415, %v410
    %v417 = vand.u32 2147483647, %v410
    %vm418 = vcmp.lt.f32.partialorder %v417, 0.0004427343
    %v419 = vsel %vm418, %v416, %v413
    %v420 = vsub.f32 %v406, %v419
    %v421 = vsub.f32 0.0, %v405
    %v422 = vmin.f32 %v421, 0.0
    %v423 = vand.u32 2147483647, %v421
    %v424 = vsub.f32 0.0, %v423
    %v425 = vmul.f32 %v424, 1.442695
    %v426 = vpow.pop %v425
    %v427 = vadd.f32 %v426, 1.0
    %v428 = vlog2.pop %v427
    %v429 = vmul.f32 %v428, 0.6931472
    %v430 = vmul.f32 -0.5, %v426
    %v431 = vadd.f32 %v430, 1.0
    %v432 = vmul.f32 %v431, %v426
    %v433 = vand.u32 2147483647, %v426
    %vm434 = vcmp.lt.f32.partialorder %v433, 0.0004427343
    %v435 = vsel %vm434, %v432, %v429
    %v436 = vsub.f32 %v422, %v435
    %v437 = vadd.f32 %v420, %v436
    %v438 = vsub.f32 0.0, %v437
    %v439 = vlaneseq
    %v440 = vshrl.u32 %v439, 7
    %v441 = vstv %s23
    %v442 = vadd.s32 %v440, %v441
    %vm443 = vcmp.lt.s32.totalorder %v442, 8
    %v444 = vsel %vm443, %v438, 0.0
    %vm445 = vcmask 7168
    %v446 = vsel %vm445, %v444, 0.0
    %447 = vadd.xlane.f32.xlu0 %v446
    %v448 = vpop.xlane.xlu0 %447
    %v449 = vrot.slane %v448, 4
    %v450 = vadd.f32 %v448, %v449
    %v451 = vrot.slane %v450, 2
    %v452 = vadd.f32 %v450, %v451
    %v453 = vrot.slane %v452, 1
    %v454 = vadd.f32 %v452, %v453
    %s455 = vtos %v454
    %s456 = sadd.f32 %s455, 0.0
    %v457 = vstv %s456
    %v458 = vadd.f32 %v457, 0.0
    %459 = vst [vmem:[#allocation10] sm:$0xff] %v458
    // Predicated region
    $region98: #{tpu_custom_call.1} parent=1 // pred_check
      _
    $region99: #{tpu_custom_call.1} parent=1 // pred_check_branch
      %461 = sbr.rel (0) target = $region101
    $region100: #{tpu_custom_call.1} parent=1 // pred_region
      %s463 = ssub.s32 128, 128
      %464 = vsyncadd [#allocation11], %s463
      %s466 = sshll.u32 [#allocation10], 4
      %s467 = int_to_ptr.vmem [resolvable:$true] %s466
      %469 = dma.vmem_to_hbm [thread:$0]  %s467, 128, %s5, [#allocation11]
    $region101: #{tpu_custom_call.1} parent=1 // pred_fallthru
      _
    // Predicated region
    $region102: #{tpu_custom_call.1} parent=1 // pred_check
      _
    $region103: #{tpu_custom_call.1} parent=1 // pred_check_branch
      %471 = sbr.rel (0) target = $region105
    $region104: #{tpu_custom_call.1} parent=1 // pred_region
      %472 = dma.done [#allocation11], 128
    $region105: #{tpu_custom_call.1} parent=1 // pred_fallthru
      _
    %473 = vsyncpa [#allocation11], 1
  %474 = vsyncmov [#allocation5]
  %s475 = vpop.sfrf %474
  %p476 = scmp.eq.s32.totalorder %s475, 0
  %p477 = pneg %p476
  %479 = shalt.err (%p477)
  %s480 = scalar_lea.sflag [#allocation5], 1
  %481 = vsyncmov %s480
  %s482 = vpop.sfrf %481
  %p483 = scmp.eq.s32.totalorder %s482, 0
  %p484 = pneg %p483
  %486 = shalt.err (%p484)
  %s487 = scalar_lea.sflag [#allocation5], 2
  %488 = vsyncmov %s487
  %s489 = vpop.sfrf %488
  %p490 = scmp.eq.s32.totalorder %s489, 0
  %p491 = pneg %p490
  %493 = shalt.err (%p491)
  %s494 = scalar_lea.sflag [#allocation5], 3
  %495 = vsyncmov %s494
  %s496 = vpop.sfrf %495
  %p497 = scmp.eq.s32.totalorder %s496, 0
  %p498 = pneg %p497
  %500 = shalt.err (%p498)
  %s501 = scalar_lea.sflag [#allocation5], 4
  %502 = vsyncmov %s501
  %s503 = vpop.sfrf %502
  %p504 = scmp.eq.s32.totalorder %s503, 0
  %p505 = pneg %p504
  %507 = shalt.err (%p505)
  %s508 = scalar_lea.sflag [#allocation5], 5
  %509 = vsyncmov %s508
  %s510 = vpop.sfrf %509
  %p511 = scmp.eq.s32.totalorder %s510, 0
  %p512 = pneg %p511
  %514 = shalt.err (%p512)

</llo_original>
